<compile_context>
chip_gen: v7x
topology: tpu7x:2x2x1
jax: 0.10.0
libtpu: 0.0.40
codegen_flags: <defaults>
</compile_context>

<pallas_src>
import jax
import jax.numpy as jnp
from jax.experimental import pallas as pl
from jax.experimental.pallas import tpu as pltpu


# ----------------------------------------------------------------------------
# Tiled linear kernel (input-gate precompute for both directions at once)
# ----------------------------------------------------------------------------
def _linear_kernel(x_ref, w_ref, b_ref, o_ref):
    o_ref[...] = (jnp.dot(x_ref[...], w_ref[...],
                          preferred_element_type=jnp.float32)
                  + b_ref[...])


def linear_pallas(x, w, b, tm=256):
    """y = x @ w + b.  x:(M,K), w:(K,N), b:(N,) -> (M,N) f32.

    M is tiled ('parallel' grid axis, shards across v7x TensorCores); K and N
    stay full (N is the lane dim and kept lane-dense by construction).
    Matmul operands are cast to bf16 with f32 accumulation.
    """
    M, K = x.shape
    N = w.shape[1]
    x = x.astype(jnp.bfloat16)
    w = w.astype(jnp.bfloat16)
    b = b.astype(jnp.float32).reshape(1, N)
    tm = min(tm, M)                      # tm == M (full dim) or a multiple of 8
    grid_m = pl.cdiv(M, tm)
    return pl.pallas_call(
        _linear_kernel,
        out_shape=jax.ShapeDtypeStruct((M, N), jnp.float32),
        grid=(grid_m,),
        in_specs=[pl.BlockSpec((tm, K), lambda i: (i, 0)),
                  pl.BlockSpec((K, N), lambda i: (0, 0)),
                  pl.BlockSpec((1, N), lambda i: (0, 0))],
        out_specs=pl.BlockSpec((tm, N), lambda i: (i, 0)),
        compiler_params=pltpu.CompilerParams(
            dimension_semantics=("parallel",)),
    )(x, w, b)


# ----------------------------------------------------------------------------
# Bidirectional LSTM recurrence: one kernel, both directions, chunked time
# ----------------------------------------------------------------------------
def _make_bilstm_kernel(B, H, Tc):
    """xg_ref: (Tc, 2B, 4H) f32   precomputed x@W_ih^T + b, fwd rows then bwd
       whh_ref: (2H, 4H) bf16     [W_hh_f^T ; W_hh_b^T] stacked along K
       out_ref: (Tc, 2B, H) f32
       h_scr:   (2B, 2H) f32      block-diag extended hidden state
       c_scr:   (2B, H)  f32
    """
    def kernel(xg_ref, whh_ref, out_ref, h_scr, c_scr):
        @pl.when(pl.program_id(0) == 0)
        def _():
            h_scr[...] = jnp.zeros_like(h_scr)
            c_scr[...] = jnp.zeros_like(c_scr)

        # Direction mask: rows [0,B) (fwd) live in cols [0,H),
        # rows [B,2B) (bwd) live in cols [H,2H).  Keeps h_ext block-diagonal
        # so a single (2B,2H)x(2H,4H) matmul applies per-direction W_hh.
        row = jax.lax.broadcasted_iota(jnp.int32, (2 * B, 2 * H), 0)
        col = jax.lax.broadcasted_iota(jnp.int32, (2 * B, 2 * H), 1)
        dir_mask = jnp.logical_or(
            jnp.logical_and(row < B, col < H),
            jnp.logical_and(row >= B, col >= H))

        h_ext = h_scr[...]               # (2B, 2H) f32
        c = c_scr[...]                   # (2B, H)  f32
        whh = whh_ref[...]               # (2H, 4H) bf16

        for i in range(Tc):              # static unroll over the time chunk
            g = xg_ref[i] + jnp.dot(h_ext.astype(jnp.bfloat16), whh,
                                    preferred_element_type=jnp.float32)
            i_g = jax.nn.sigmoid(g[:, 0 * H:1 * H])
            f_g = jax.nn.sigmoid(g[:, 1 * H:2 * H])
            g_g = jnp.tanh(g[:, 2 * H:3 * H])
            o_g = jax.nn.sigmoid(g[:, 3 * H:4 * H])
            c = f_g * c + i_g * g_g
            h_new = o_g * jnp.tanh(c)
            out_ref[i] = h_new
            h_tile = jnp.concatenate([h_new, h_new], axis=1)   # (2B, 2H)
            h_ext = jnp.where(dir_mask, h_tile, 0.0)

        h_scr[...] = h_ext
        c_scr[...] = c

    return kernel


def bilstm_pallas(x, lens, p, Tc=8):
    """Bidirectional LSTM over padded (B, T, D); outputs zeroed at padding.

    Returns (B, T, 2H) with [fwd ; bwd] concatenated on the feature axis,
    matching PyTorch nn.LSTM(bidirectional=True) + pad_packed_sequence.
    """
    B, T, D = x.shape
    H = p['w_hh'].shape[1]

    t_idx = jnp.arange(T, dtype=jnp.int32)[None, :]
    valid = t_idx < lens[:, None]
    mask = valid.astype(jnp.float32)                              # (B, T)
    # reverse each sequence within its valid length (involution on valid part)
    rev_idx = jnp.where(valid, lens[:, None] - 1 - t_idx, t_idx)  # (B, T)

    # ---- fused fwd+bwd input-gate precompute: ONE Pallas matmul ----
    w_both = jnp.concatenate([p['w_ih'].T, p['w_ih_r'].T], axis=1)   # (D, 8H)
    b_both = jnp.concatenate([p['b_ih'] + p['b_hh'],
                              p['b_ih_r'] + p['b_hh_r']])            # (8H,)
    xg = linear_pallas(x.reshape(B * T, D), w_both, b_both)          # (B*T,8H)
    xg = xg.reshape(B, T, 8 * H)
    xg_f = xg[..., :4 * H]
    # bwd gates, re-ordered so the recurrence walks the sequence backwards
    xg_b = jnp.take_along_axis(xg[..., 4 * H:], rev_idx[:, :, None], axis=1)

    # stack directions on the batch axis; time-major for the recurrence kernel
    xg_tm = jnp.concatenate([xg_f, xg_b], axis=0).transpose(1, 0, 2)  # (T,2B,4H)

    # pad time to a multiple of Tc (padded steps are masked away afterwards)
    Tp = pl.cdiv(T, Tc) * Tc
    if Tp != T:
        xg_tm = jnp.pad(xg_tm, ((0, Tp - T), (0, 0), (0, 0)))

    # stacked recurrent weights, bf16 operands / f32 accumulation
    whh = jnp.concatenate([p['w_hh'].T, p['w_hh_r'].T],
                          axis=0).astype(jnp.bfloat16)               # (2H,4H)

    kernel = _make_bilstm_kernel(B, H, Tc)
    out_tm = pl.pallas_call(
        kernel,
        out_shape=jax.ShapeDtypeStruct((Tp, 2 * B, H), jnp.float32),
        grid=(Tp // Tc,),
        in_specs=[pl.BlockSpec((Tc, 2 * B, 4 * H), lambda t: (t, 0, 0)),
                  pl.BlockSpec((2 * H, 4 * H), lambda t: (0, 0))],
        out_specs=pl.BlockSpec((Tc, 2 * B, H), lambda t: (t, 0, 0)),
        scratch_shapes=[pltpu.VMEM((2 * B, 2 * H), jnp.float32),
                        pltpu.VMEM((2 * B, H), jnp.float32)],
        compiler_params=pltpu.CompilerParams(
            dimension_semantics=("arbitrary",)),
    )(xg_tm, whh)                                                    # (Tp,2B,H)

    out = out_tm[:T].transpose(1, 0, 2)                              # (2B,T,H)
    out_f = out[:B]
    out_b = jnp.take_along_axis(out[B:], rev_idx[:, :, None], axis=1)
    # single fused mask multiply (replaces the per-step in-kernel mask)
    return jnp.concatenate([out_f, out_b], axis=-1) * mask[:, :, None]


# ----------------------------------------------------------------------------
# pBLSTM forward (the PyTorch module): halve time, double features, BiLSTM
# ----------------------------------------------------------------------------
def pblstm_forward(x, lens, params, Tc=8):
    """x: (B, T, D) padded (zeros beyond lens), lens: (B,) int32.
    Returns (out, new_lens): out is (B, T//2, 2H) with zeros at padding,
    emulating the packed output of the PyTorch module."""
    B, T, D = x.shape
    T2 = T // 2
    x = x[:, :2 * T2, :].reshape(B, T2, 2 * D)       # drop last odd frame
    lens2 = jnp.asarray(lens, jnp.int32) // 2
    out = bilstm_pallas(x, lens2, params, Tc=Tc)
    return out, lens2


# ----------------------------------------------------------------------------
# Deterministic parameter init (PyTorch nn.LSTM shapes, input_size = 2*D)
# ----------------------------------------------------------------------------
def init_pblstm_params(key, input_dim, hidden_dim):
    in_size = 2 * input_dim
    k = 1.0 / jnp.sqrt(float(hidden_dim))
    ks = jax.random.split(key, 8)
    u = lambda kk, shape: jax.random.uniform(kk, shape, jnp.float32, -k, k)
    H4 = 4 * hidden_dim
    return dict(
        w_ih=u(ks[0], (H4, in_size)), w_hh=u(ks[1], (H4, hidden_dim)),
        b_ih=u(ks[2], (H4,)),         b_hh=u(ks[3], (H4,)),
        w_ih_r=u(ks[4], (H4, in_size)), w_hh_r=u(ks[5], (H4, hidden_dim)),
        b_ih_r=u(ks[6], (H4,)),         b_hh_r=u(ks[7], (H4,)),
    )


# ----------------------------------------------------------------------------
if __name__ == "__main__":
    B, T = 2, 16
    input_dim, hidden_dim = 8, 32     # 4H = 128 -> lane-dense gate tensor

    root = jax.random.PRNGKey(0)
    kx, kp = jax.random.split(root)

    x = jax.random.normal(kx, (B, T, input_dim), jnp.float32)
    lens = jnp.array([16, 12], jnp.int32)
    pad = (jnp.arange(T)[None, :] < lens[:, None]).astype(jnp.float32)
    x = x * pad[:, :, None]           # padded batch, like pad_sequence output

    params = init_pblstm_params(kp, input_dim, hidden_dim)

    fwd = jax.jit(pblstm_forward)
    out, lens2 = fwd(x, lens, params)
    jax.block_until_ready((out, lens2))

    assert out.shape == (B, T // 2, 2 * hidden_dim), out.shape
    assert out.dtype == jnp.float32
    assert bool(jnp.all(jnp.isfinite(out)))
    # packed-sequence semantics: padded timesteps are exactly zero
    assert int(lens2[1]) == 6
    assert bool(jnp.all(out[1, 6:] == 0.0))
    # valid timesteps are (almost surely) non-zero
    assert bool(jnp.any(jnp.abs(out[1, :6]) > 0.0))

    print("KERNEL_OK")
</pallas_src>

<mosaic_0001>
module attributes {stable_mosaic.version = 11 : i64} {
  func.func @_linear_kernel(%arg0: i32, %arg1: memref<16x16xbf16, #tpu.memory_space<vmem>>, %arg2: memref<16x256xbf16, #tpu.memory_space<vmem>>, %arg3: memref<1x256xf32, #tpu.memory_space<vmem>>, %arg4: memref<16x256xf32, #tpu.memory_space<vmem>>) attributes {dimension_semantics = [#tpu.dimension_semantics<parallel>], iteration_bounds = array<i64: 1>, scalar_prefetch = 0 : i64, scratch_operands = 0 : i64, tpu.core_type = #tpu.core_type<tc>, window_params = [{transform_indices = @transform_0, window_bounds = array<i64: 16, 16>}, {pipeline_mode = #tpu.pipeline_mode<synchronous>, transform_indices = @transform_1, window_bounds = array<i64: 16, 256>}, {pipeline_mode = #tpu.pipeline_mode<synchronous>, transform_indices = @transform_2, window_bounds = array<i64: 1, 256>}, {transform_indices = @transform_3, window_bounds = array<i64: 16, 256>}]} {
    %c0 = arith.constant 0 : index
    %c0_0 = arith.constant 0 : index
    %0 = vector.load %arg1[%c0, %c0_0] : memref<16x16xbf16, #tpu.memory_space<vmem>>, vector<16x16xbf16>
    %c0_1 = arith.constant 0 : index
    %c0_2 = arith.constant 0 : index
    %1 = vector.load %arg2[%c0_1, %c0_2] : memref<16x256xbf16, #tpu.memory_space<vmem>>, vector<16x256xbf16>
    %cst = arith.constant dense<0.000000e+00> : vector<16x256xf32>
    %2 = tpu.matmul %0, %1, %cst {dimension_numbers = #tpu.dot_dimension_numbers<[1], [0], [0], [1], [0, 0, 1, 1], [], []>} : vector<16x16xbf16>, vector<16x256xbf16>, vector<16x256xf32> -> vector<16x256xf32>
    %c0_3 = arith.constant 0 : index
    %c0_4 = arith.constant 0 : index
    %3 = vector.load %arg3[%c0_3, %c0_4] : memref<1x256xf32, #tpu.memory_space<vmem>>, vector<1x256xf32>
    %4 = vector.broadcast %3 : vector<1x256xf32> to vector<16x256xf32>
    %5 = arith.addf %2, %4 : vector<16x256xf32>
    %c0_5 = arith.constant 0 : index
    %c0_6 = arith.constant 0 : index
    %6 = vector.load %arg4[%c0_5, %c0_6] : memref<16x256xf32, #tpu.memory_space<vmem>>, vector<16x256xf32>
    tpu.vector_store %arg4[%c0_5, %c0_6], %5 {strides = array<i32>} : memref<16x256xf32, #tpu.memory_space<vmem>>, vector<16x256xf32>,
    return
  }
  func.func @transform_0(%arg0: i32) -> (i32, i32) {
    %c0_i32 = arith.constant 0 : i32
    %c0_i32_0 = arith.constant 0 : i32
    return %arg0, %c0_i32 : i32, i32
  }
  func.func @transform_1(%arg0: i32) -> (i32, i32) {
    %c0_i32 = arith.constant 0 : i32
    %c0_i32_0 = arith.constant 0 : i32
    %c0_i32_1 = arith.constant 0 : i32
    return %c0_i32, %c0_i32_0 : i32, i32
  }
  func.func @transform_2(%arg0: i32) -> (i32, i32) {
    %c0_i32 = arith.constant 0 : i32
    %c0_i32_0 = arith.constant 0 : i32
    %c0_i32_1 = arith.constant 0 : i32
    return %c0_i32, %c0_i32_0 : i32, i32
  }
  func.func @transform_3(%arg0: i32) -> (i32, i32) {
    %c0_i32 = arith.constant 0 : i32
    %c0_i32_0 = arith.constant 0 : i32
    return %arg0, %c0_i32 : i32, i32
  }
}

module attributes {stable_mosaic.version = 11 : i64} {
  func.func @kernel(%arg0: i32, %arg1: memref<8x4x128xf32, #tpu.memory_space<vmem>>, %arg2: memref<64x128xbf16, #tpu.memory_space<vmem>>, %arg3: memref<8x4x32xf32, #tpu.memory_space<vmem>>, %arg4: memref<4x64xf32, #tpu.memory_space<vmem>>, %arg5: memref<4x32xf32, #tpu.memory_space<vmem>>) attributes {dimension_semantics = [#tpu.dimension_semantics<arbitrary>], iteration_bounds = array<i64: 1>, scalar_prefetch = 0 : i64, scratch_operands = 2 : i64, tpu.core_type = #tpu.core_type<tc>, window_params = [{transform_indices = @transform_0, window_bounds = array<i64: 8, 4, 128>}, {pipeline_mode = #tpu.pipeline_mode<synchronous>, transform_indices = @transform_1, window_bounds = array<i64: 64, 128>}, {transform_indices = @transform_2, window_bounds = array<i64: 8, 4, 32>}]} {
    %c0_i32 = arith.constant 0 : i32
    %0 = arith.cmpi eq, %arg0, %c0_i32 : i32
    %1 = arith.extui %0 : i1 to i32
    %c0_i32_0 = arith.constant 0 : i32
    %2 = arith.cmpi ne, %1, %c0_i32_0 : i32
    scf.if %2 {
      %cst_92 = arith.constant 0.000000e+00 : f32
      %309 = vector.broadcast %cst_92 : f32 to vector<4x64xf32>
      %c0_93 = arith.constant 0 : index
      %c0_94 = arith.constant 0 : index
      %310 = vector.load %arg4[%c0_93, %c0_94] : memref<4x64xf32, #tpu.memory_space<vmem>>, vector<4x64xf32>
      tpu.vector_store %arg4[%c0_93, %c0_94], %309 {strides = array<i32>} : memref<4x64xf32, #tpu.memory_space<vmem>>, vector<4x64xf32>,
      %cst_95 = arith.constant 0.000000e+00 : f32
      %311 = vector.broadcast %cst_95 : f32 to vector<4x32xf32>
      %c0_96 = arith.constant 0 : index
      %c0_97 = arith.constant 0 : index
      %312 = vector.load %arg5[%c0_96, %c0_97] : memref<4x32xf32, #tpu.memory_space<vmem>>, vector<4x32xf32>
      tpu.vector_store %arg5[%c0_96, %c0_97], %311 {strides = array<i32>} : memref<4x32xf32, #tpu.memory_space<vmem>>, vector<4x32xf32>,
    } else {
    }
    %3 = tpu.iota {dimensions = array<i32: 0>} : vector<4x64xi32>
    %4 = tpu.iota {dimensions = array<i32: 1>} : vector<4x64xi32>
    %c2_i32 = arith.constant 2 : i32
    %5 = vector.broadcast %c2_i32 : i32 to vector<4x64xi32>
    %6 = arith.cmpi slt, %3, %5 : vector<4x64xi32>
    %c32_i32 = arith.constant 32 : i32
    %7 = vector.broadcast %c32_i32 : i32 to vector<4x64xi32>
    %8 = arith.cmpi slt, %4, %7 : vector<4x64xi32>
    %9 = arith.andi %6, %8 : vector<4x64xi1>
    %c2_i32_1 = arith.constant 2 : i32
    %10 = vector.broadcast %c2_i32_1 : i32 to vector<4x64xi32>
    %11 = arith.cmpi sge, %3, %10 : vector<4x64xi32>
    %c32_i32_2 = arith.constant 32 : i32
    %12 = vector.broadcast %c32_i32_2 : i32 to vector<4x64xi32>
    %13 = arith.cmpi sge, %4, %12 : vector<4x64xi32>
    %14 = arith.andi %11, %13 : vector<4x64xi1>
    %15 = arith.ori %9, %14 : vector<4x64xi1>
    %c0 = arith.constant 0 : index
    %c0_3 = arith.constant 0 : index
    %16 = vector.load %arg4[%c0, %c0_3] : memref<4x64xf32, #tpu.memory_space<vmem>>, vector<4x64xf32>
    %c0_4 = arith.constant 0 : index
    %c0_5 = arith.constant 0 : index
    %17 = vector.load %arg5[%c0_4, %c0_5] : memref<4x32xf32, #tpu.memory_space<vmem>>, vector<4x32xf32>
    %c0_6 = arith.constant 0 : index
    %c0_7 = arith.constant 0 : index
    %18 = vector.load %arg2[%c0_6, %c0_7] : memref<64x128xbf16, #tpu.memory_space<vmem>>, vector<64x128xbf16>
    %c0_8 = arith.constant 0 : index
    %c0_9 = arith.constant 0 : index
    %c0_10 = arith.constant 0 : index
    %19 = vector.load %arg1[%c0_8, %c0_9, %c0_10] : memref<8x4x128xf32, #tpu.memory_space<vmem>>, vector<1x4x128xf32>
    %20 = vector.shape_cast %19 : vector<1x4x128xf32> to vector<4x128xf32>
    %21 = arith.truncf %16 : vector<4x64xf32> to vector<4x64xbf16>
    %cst = arith.constant dense<0.000000e+00> : vector<4x128xf32>
    %22 = tpu.matmul %21, %18, %cst {dimension_numbers = #tpu.dot_dimension_numbers<[1], [0], [0], [1], [0, 0, 1, 1], [], []>} : vector<4x64xbf16>, vector<64x128xbf16>, vector<4x128xf32> -> vector<4x128xf32>
    %23 = arith.addf %20, %22 : vector<4x128xf32>
    %24 = vector.extract_strided_slice %23 {offsets = [0, 0], sizes = [4, 32], strides = [1, 1]} : vector<4x128xf32> to vector<4x32xf32>
    %25 = arith.negf %24 : vector<4x32xf32>
    %26 = math.exp %25 : vector<4x32xf32>
    %cst_11 = arith.constant 1.000000e+00 : f32
    %27 = vector.broadcast %cst_11 : f32 to vector<4x32xf32>
    %28 = arith.addf %27, %26 : vector<4x32xf32>
    %29 = arith.divf %27, %28 : vector<4x32xf32>
    %30 = vector.extract_strided_slice %23 {offsets = [0, 32], sizes = [4, 32], strides = [1, 1]} : vector<4x128xf32> to vector<4x32xf32>
    %31 = arith.negf %30 : vector<4x32xf32>
    %32 = math.exp %31 : vector<4x32xf32>
    %cst_12 = arith.constant 1.000000e+00 : f32
    %33 = vector.broadcast %cst_12 : f32 to vector<4x32xf32>
    %34 = arith.addf %33, %32 : vector<4x32xf32>
    %35 = arith.divf %33, %34 : vector<4x32xf32>
    %36 = vector.extract_strided_slice %23 {offsets = [0, 64], sizes = [4, 32], strides = [1, 1]} : vector<4x128xf32> to vector<4x32xf32>
    %37 = math.tanh %36 : vector<4x32xf32>
    %38 = vector.extract_strided_slice %23 {offsets = [0, 96], sizes = [4, 32], strides = [1, 1]} : vector<4x128xf32> to vector<4x32xf32>
    %39 = arith.negf %38 : vector<4x32xf32>
    %40 = math.exp %39 : vector<4x32xf32>
    %cst_13 = arith.constant 1.000000e+00 : f32
    %41 = vector.broadcast %cst_13 : f32 to vector<4x32xf32>
    %42 = arith.addf %41, %40 : vector<4x32xf32>
    %43 = arith.divf %41, %42 : vector<4x32xf32>
    %44 = arith.mulf %35, %17 : vector<4x32xf32>
    %45 = arith.mulf %29, %37 : vector<4x32xf32>
    %46 = arith.addf %44, %45 : vector<4x32xf32>
    %47 = math.tanh %46 : vector<4x32xf32>
    %48 = arith.mulf %43, %47 : vector<4x32xf32>
    %c0_14 = arith.constant 0 : index
    %c0_15 = arith.constant 0 : index
    %c0_16 = arith.constant 0 : index
    %49 = vector.load %arg3[%c0_14, %c0_15, %c0_16] : memref<8x4x32xf32, #tpu.memory_space<vmem>>, vector<1x4x32xf32>
    %50 = vector.shape_cast %49 : vector<1x4x32xf32> to vector<4x32xf32>
    %51 = vector.shape_cast %48 : vector<4x32xf32> to vector<1x4x32xf32>
    tpu.vector_store %arg3[%c0_14, %c0_15, %c0_16], %51 {strides = array<i32>} : memref<8x4x32xf32, #tpu.memory_space<vmem>>, vector<1x4x32xf32>,
    %52 = tpu.concatenate %48, %48 in 1 : vector<4x32xf32>, vector<4x32xf32> -> vector<4x64xf32>
    %cst_17 = arith.constant 0.000000e+00 : f32
    %53 = vector.broadcast %cst_17 : f32 to vector<4x64xf32>
    %54 = arith.select %15, %52, %53 : vector<4x64xi1>, vector<4x64xf32>
    %c1 = arith.constant 1 : index
    %c0_18 = arith.constant 0 : index
    %c0_19 = arith.constant 0 : index
    %55 = vector.load %arg1[%c1, %c0_18, %c0_19] : memref<8x4x128xf32, #tpu.memory_space<vmem>>, vector<1x4x128xf32>
    %56 = vector.shape_cast %55 : vector<1x4x128xf32> to vector<4x128xf32>
    %57 = arith.truncf %54 : vector<4x64xf32> to vector<4x64xbf16>
    %cst_20 = arith.constant dense<0.000000e+00> : vector<4x128xf32>
    %58 = tpu.matmul %57, %18, %cst_20 {dimension_numbers = #tpu.dot_dimension_numbers<[1], [0], [0], [1], [0, 0, 1, 1], [], []>} : vector<4x64xbf16>, vector<64x128xbf16>, vector<4x128xf32> -> vector<4x128xf32>
    %59 = arith.addf %56, %58 : vector<4x128xf32>
    %60 = vector.extract_strided_slice %59 {offsets = [0, 0], sizes = [4, 32], strides = [1, 1]} : vector<4x128xf32> to vector<4x32xf32>
    %61 = arith.negf %60 : vector<4x32xf32>
    %62 = math.exp %61 : vector<4x32xf32>
    %cst_21 = arith.constant 1.000000e+00 : f32
    %63 = vector.broadcast %cst_21 : f32 to vector<4x32xf32>
    %64 = arith.addf %63, %62 : vector<4x32xf32>
    %65 = arith.divf %63, %64 : vector<4x32xf32>
    %66 = vector.extract_strided_slice %59 {offsets = [0, 32], sizes = [4, 32], strides = [1, 1]} : vector<4x128xf32> to vector<4x32xf32>
    %67 = arith.negf %66 : vector<4x32xf32>
    %68 = math.exp %67 : vector<4x32xf32>
    %cst_22 = arith.constant 1.000000e+00 : f32
    %69 = vector.broadcast %cst_22 : f32 to vector<4x32xf32>
    %70 = arith.addf %69, %68 : vector<4x32xf32>
    %71 = arith.divf %69, %70 : vector<4x32xf32>
    %72 = vector.extract_strided_slice %59 {offsets = [0, 64], sizes = [4, 32], strides = [1, 1]} : vector<4x128xf32> to vector<4x32xf32>
    %73 = math.tanh %72 : vector<4x32xf32>
    %74 = vector.extract_strided_slice %59 {offsets = [0, 96], sizes = [4, 32], strides = [1, 1]} : vector<4x128xf32> to vector<4x32xf32>
    %75 = arith.negf %74 : vector<4x32xf32>
    %76 = math.exp %75 : vector<4x32xf32>
    %cst_23 = arith.constant 1.000000e+00 : f32
    %77 = vector.broadcast %cst_23 : f32 to vector<4x32xf32>
    %78 = arith.addf %77, %76 : vector<4x32xf32>
    %79 = arith.divf %77, %78 : vector<4x32xf32>
    %80 = arith.mulf %71, %46 : vector<4x32xf32>
    %81 = arith.mulf %65, %73 : vector<4x32xf32>
    %82 = arith.addf %80, %81 : vector<4x32xf32>
    %83 = math.tanh %82 : vector<4x32xf32>
    %84 = arith.mulf %79, %83 : vector<4x32xf32>
    %c1_24 = arith.constant 1 : index
    %c0_25 = arith.constant 0 : index
    %c0_26 = arith.constant 0 : index
    %85 = vector.load %arg3[%c1_24, %c0_25, %c0_26] : memref<8x4x32xf32, #tpu.memory_space<vmem>>, vector<1x4x32xf32>
    %86 = vector.shape_cast %85 : vector<1x4x32xf32> to vector<4x32xf32>
    %87 = vector.shape_cast %84 : vector<4x32xf32> to vector<1x4x32xf32>
    tpu.vector_store %arg3[%c1_24, %c0_25, %c0_26], %87 {strides = array<i32>} : memref<8x4x32xf32, #tpu.memory_space<vmem>>, vector<1x4x32xf32>,
    %88 = tpu.concatenate %84, %84 in 1 : vector<4x32xf32>, vector<4x32xf32> -> vector<4x64xf32>
    %cst_27 = arith.constant 0.000000e+00 : f32
    %89 = vector.broadcast %cst_27 : f32 to vector<4x64xf32>
    %90 = arith.select %15, %88, %89 : vector<4x64xi1>, vector<4x64xf32>
    %c2 = arith.constant 2 : index
    %c0_28 = arith.constant 0 : index
    %c0_29 = arith.constant 0 : index
    %91 = vector.load %arg1[%c2, %c0_28, %c0_29] : memref<8x4x128xf32, #tpu.memory_space<vmem>>, vector<1x4x128xf32>
    %92 = vector.shape_cast %91 : vector<1x4x128xf32> to vector<4x128xf32>
    %93 = arith.truncf %90 : vector<4x64xf32> to vector<4x64xbf16>
    %cst_30 = arith.constant dense<0.000000e+00> : vector<4x128xf32>
    %94 = tpu.matmul %93, %18, %cst_30 {dimension_numbers = #tpu.dot_dimension_numbers<[1], [0], [0], [1], [0, 0, 1, 1], [], []>} : vector<4x64xbf16>, vector<64x128xbf16>, vector<4x128xf32> -> vector<4x128xf32>
    %95 = arith.addf %92, %94 : vector<4x128xf32>
    %96 = vector.extract_strided_slice %95 {offsets = [0, 0], sizes = [4, 32], strides = [1, 1]} : vector<4x128xf32> to vector<4x32xf32>
    %97 = arith.negf %96 : vector<4x32xf32>
    %98 = math.exp %97 : vector<4x32xf32>
    %cst_31 = arith.constant 1.000000e+00 : f32
    %99 = vector.broadcast %cst_31 : f32 to vector<4x32xf32>
    %100 = arith.addf %99, %98 : vector<4x32xf32>
    %101 = arith.divf %99, %100 : vector<4x32xf32>
    %102 = vector.extract_strided_slice %95 {offsets = [0, 32], sizes = [4, 32], strides = [1, 1]} : vector<4x128xf32> to vector<4x32xf32>
    %103 = arith.negf %102 : vector<4x32xf32>
    %104 = math.exp %103 : vector<4x32xf32>
    %cst_32 = arith.constant 1.000000e+00 : f32
    %105 = vector.broadcast %cst_32 : f32 to vector<4x32xf32>
    %106 = arith.addf %105, %104 : vector<4x32xf32>
    %107 = arith.divf %105, %106 : vector<4x32xf32>
    %108 = vector.extract_strided_slice %95 {offsets = [0, 64], sizes = [4, 32], strides = [1, 1]} : vector<4x128xf32> to vector<4x32xf32>
    %109 = math.tanh %108 : vector<4x32xf32>
    %110 = vector.extract_strided_slice %95 {offsets = [0, 96], sizes = [4, 32], strides = [1, 1]} : vector<4x128xf32> to vector<4x32xf32>
    %111 = arith.negf %110 : vector<4x32xf32>
    %112 = math.exp %111 : vector<4x32xf32>
    %cst_33 = arith.constant 1.000000e+00 : f32
    %113 = vector.broadcast %cst_33 : f32 to vector<4x32xf32>
    %114 = arith.addf %113, %112 : vector<4x32xf32>
    %115 = arith.divf %113, %114 : vector<4x32xf32>
    %116 = arith.mulf %107, %82 : vector<4x32xf32>
    %117 = arith.mulf %101, %109 : vector<4x32xf32>
    %118 = arith.addf %116, %117 : vector<4x32xf32>
    %119 = math.tanh %118 : vector<4x32xf32>
    %120 = arith.mulf %115, %119 : vector<4x32xf32>
    %c2_34 = arith.constant 2 : index
    %c0_35 = arith.constant 0 : index
    %c0_36 = arith.constant 0 : index
    %121 = vector.load %arg3[%c2_34, %c0_35, %c0_36] : memref<8x4x32xf32, #tpu.memory_space<vmem>>, vector<1x4x32xf32>
    %122 = vector.shape_cast %121 : vector<1x4x32xf32> to vector<4x32xf32>
    %123 = vector.shape_cast %120 : vector<4x32xf32> to vector<1x4x32xf32>
    tpu.vector_store %arg3[%c2_34, %c0_35, %c0_36], %123 {strides = array<i32>} : memref<8x4x32xf32, #tpu.memory_space<vmem>>, vector<1x4x32xf32>,
    %124 = tpu.concatenate %120, %120 in 1 : vector<4x32xf32>, vector<4x32xf32> -> vector<4x64xf32>
    %cst_37 = arith.constant 0.000000e+00 : f32
    %125 = vector.broadcast %cst_37 : f32 to vector<4x64xf32>
    %126 = arith.select %15, %124, %125 : vector<4x64xi1>, vector<4x64xf32>
    %c3 = arith.constant 3 : index
    %c0_38 = arith.constant 0 : index
    %c0_39 = arith.constant 0 : index
    %127 = vector.load %arg1[%c3, %c0_38, %c0_39] : memref<8x4x128xf32, #tpu.memory_space<vmem>>, vector<1x4x128xf32>
    %128 = vector.shape_cast %127 : vector<1x4x128xf32> to vector<4x128xf32>
    %129 = arith.truncf %126 : vector<4x64xf32> to vector<4x64xbf16>
    %cst_40 = arith.constant dense<0.000000e+00> : vector<4x128xf32>
    %130 = tpu.matmul %129, %18, %cst_40 {dimension_numbers = #tpu.dot_dimension_numbers<[1], [0], [0], [1], [0, 0, 1, 1], [], []>} : vector<4x64xbf16>, vector<64x128xbf16>, vector<4x128xf32> -> vector<4x128xf32>
    %131 = arith.addf %128, %130 : vector<4x128xf32>
    %132 = vector.extract_strided_slice %131 {offsets = [0, 0], sizes = [4, 32], strides = [1, 1]} : vector<4x128xf32> to vector<4x32xf32>
    %133 = arith.negf %132 : vector<4x32xf32>
    %134 = math.exp %133 : vector<4x32xf32>
    %cst_41 = arith.constant 1.000000e+00 : f32
    %135 = vector.broadcast %cst_41 : f32 to vector<4x32xf32>
    %136 = arith.addf %135, %134 : vector<4x32xf32>
    %137 = arith.divf %135, %136 : vector<4x32xf32>
    %138 = vector.extract_strided_slice %131 {offsets = [0, 32], sizes = [4, 32], strides = [1, 1]} : vector<4x128xf32> to vector<4x32xf32>
    %139 = arith.negf %138 : vector<4x32xf32>
    %140 = math.exp %139 : vector<4x32xf32>
    %cst_42 = arith.constant 1.000000e+00 : f32
    %141 = vector.broadcast %cst_42 : f32 to vector<4x32xf32>
    %142 = arith.addf %141, %140 : vector<4x32xf32>
    %143 = arith.divf %141, %142 : vector<4x32xf32>
    %144 = vector.extract_strided_slice %131 {offsets = [0, 64], sizes = [4, 32], strides = [1, 1]} : vector<4x128xf32> to vector<4x32xf32>
    %145 = math.tanh %144 : vector<4x32xf32>
    %146 = vector.extract_strided_slice %131 {offsets = [0, 96], sizes = [4, 32], strides = [1, 1]} : vector<4x128xf32> to vector<4x32xf32>
    %147 = arith.negf %146 : vector<4x32xf32>
    %148 = math.exp %147 : vector<4x32xf32>
    %cst_43 = arith.constant 1.000000e+00 : f32
    %149 = vector.broadcast %cst_43 : f32 to vector<4x32xf32>
    %150 = arith.addf %149, %148 : vector<4x32xf32>
    %151 = arith.divf %149, %150 : vector<4x32xf32>
    %152 = arith.mulf %143, %118 : vector<4x32xf32>
    %153 = arith.mulf %137, %145 : vector<4x32xf32>
    %154 = arith.addf %152, %153 : vector<4x32xf32>
    %155 = math.tanh %154 : vector<4x32xf32>
    %156 = arith.mulf %151, %155 : vector<4x32xf32>
    %c3_44 = arith.constant 3 : index
    %c0_45 = arith.constant 0 : index
    %c0_46 = arith.constant 0 : index
    %157 = vector.load %arg3[%c3_44, %c0_45, %c0_46] : memref<8x4x32xf32, #tpu.memory_space<vmem>>, vector<1x4x32xf32>
    %158 = vector.shape_cast %157 : vector<1x4x32xf32> to vector<4x32xf32>
    %159 = vector.shape_cast %156 : vector<4x32xf32> to vector<1x4x32xf32>
    tpu.vector_store %arg3[%c3_44, %c0_45, %c0_46], %159 {strides = array<i32>} : memref<8x4x32xf32, #tpu.memory_space<vmem>>, vector<1x4x32xf32>,
    %160 = tpu.concatenate %156, %156 in 1 : vector<4x32xf32>, vector<4x32xf32> -> vector<4x64xf32>
    %cst_47 = arith.constant 0.000000e+00 : f32
    %161 = vector.broadcast %cst_47 : f32 to vector<4x64xf32>
    %162 = arith.select %15, %160, %161 : vector<4x64xi1>, vector<4x64xf32>
    %c4 = arith.constant 4 : index
    %c0_48 = arith.constant 0 : index
    %c0_49 = arith.constant 0 : index
    %163 = vector.load %arg1[%c4, %c0_48, %c0_49] : memref<8x4x128xf32, #tpu.memory_space<vmem>>, vector<1x4x128xf32>
    %164 = vector.shape_cast %163 : vector<1x4x128xf32> to vector<4x128xf32>
    %165 = arith.truncf %162 : vector<4x64xf32> to vector<4x64xbf16>
    %cst_50 = arith.constant dense<0.000000e+00> : vector<4x128xf32>
    %166 = tpu.matmul %165, %18, %cst_50 {dimension_numbers = #tpu.dot_dimension_numbers<[1], [0], [0], [1], [0, 0, 1, 1], [], []>} : vector<4x64xbf16>, vector<64x128xbf16>, vector<4x128xf32> -> vector<4x128xf32>
    %167 = arith.addf %164, %166 : vector<4x128xf32>
    %168 = vector.extract_strided_slice %167 {offsets = [0, 0], sizes = [4, 32], strides = [1, 1]} : vector<4x128xf32> to vector<4x32xf32>
    %169 = arith.negf %168 : vector<4x32xf32>
    %170 = math.exp %169 : vector<4x32xf32>
    %cst_51 = arith.constant 1.000000e+00 : f32
    %171 = vector.broadcast %cst_51 : f32 to vector<4x32xf32>
    %172 = arith.addf %171, %170 : vector<4x32xf32>
    %173 = arith.divf %171, %172 : vector<4x32xf32>
    %174 = vector.extract_strided_slice %167 {offsets = [0, 32], sizes = [4, 32], strides = [1, 1]} : vector<4x128xf32> to vector<4x32xf32>
    %175 = arith.negf %174 : vector<4x32xf32>
    %176 = math.exp %175 : vector<4x32xf32>
    %cst_52 = arith.constant 1.000000e+00 : f32
    %177 = vector.broadcast %cst_52 : f32 to vector<4x32xf32>
    %178 = arith.addf %177, %176 : vector<4x32xf32>
    %179 = arith.divf %177, %178 : vector<4x32xf32>
    %180 = vector.extract_strided_slice %167 {offsets = [0, 64], sizes = [4, 32], strides = [1, 1]} : vector<4x128xf32> to vector<4x32xf32>
    %181 = math.tanh %180 : vector<4x32xf32>
    %182 = vector.extract_strided_slice %167 {offsets = [0, 96], sizes = [4, 32], strides = [1, 1]} : vector<4x128xf32> to vector<4x32xf32>
    %183 = arith.negf %182 : vector<4x32xf32>
    %184 = math.exp %183 : vector<4x32xf32>
    %cst_53 = arith.constant 1.000000e+00 : f32
    %185 = vector.broadcast %cst_53 : f32 to vector<4x32xf32>
    %186 = arith.addf %185, %184 : vector<4x32xf32>
    %187 = arith.divf %185, %186 : vector<4x32xf32>
    %188 = arith.mulf %179, %154 : vector<4x32xf32>
    %189 = arith.mulf %173, %181 : vector<4x32xf32>
    %190 = arith.addf %188, %189 : vector<4x32xf32>
    %191 = math.tanh %190 : vector<4x32xf32>
    %192 = arith.mulf %187, %191 : vector<4x32xf32>
    %c4_54 = arith.constant 4 : index
    %c0_55 = arith.constant 0 : index
    %c0_56 = arith.constant 0 : index
    %193 = vector.load %arg3[%c4_54, %c0_55, %c0_56] : memref<8x4x32xf32, #tpu.memory_space<vmem>>, vector<1x4x32xf32>
    %194 = vector.shape_cast %193 : vector<1x4x32xf32> to vector<4x32xf32>
    %195 = vector.shape_cast %192 : vector<4x32xf32> to vector<1x4x32xf32>
    tpu.vector_store %arg3[%c4_54, %c0_55, %c0_56], %195 {strides = array<i32>} : memref<8x4x32xf32, #tpu.memory_space<vmem>>, vector<1x4x32xf32>,
    %196 = tpu.concatenate %192, %192 in 1 : vector<4x32xf32>, vector<4x32xf32> -> vector<4x64xf32>
    %cst_57 = arith.constant 0.000000e+00 : f32
    %197 = vector.broadcast %cst_57 : f32 to vector<4x64xf32>
    %198 = arith.select %15, %196, %197 : vector<4x64xi1>, vector<4x64xf32>
    %c5 = arith.constant 5 : index
    %c0_58 = arith.constant 0 : index
    %c0_59 = arith.constant 0 : index
    %199 = vector.load %arg1[%c5, %c0_58, %c0_59] : memref<8x4x128xf32, #tpu.memory_space<vmem>>, vector<1x4x128xf32>
    %200 = vector.shape_cast %199 : vector<1x4x128xf32> to vector<4x128xf32>
    %201 = arith.truncf %198 : vector<4x64xf32> to vector<4x64xbf16>
    %cst_60 = arith.constant dense<0.000000e+00> : vector<4x128xf32>
    %202 = tpu.matmul %201, %18, %cst_60 {dimension_numbers = #tpu.dot_dimension_numbers<[1], [0], [0], [1], [0, 0, 1, 1], [], []>} : vector<4x64xbf16>, vector<64x128xbf16>, vector<4x128xf32> -> vector<4x128xf32>
    %203 = arith.addf %200, %202 : vector<4x128xf32>
    %204 = vector.extract_strided_slice %203 {offsets = [0, 0], sizes = [4, 32], strides = [1, 1]} : vector<4x128xf32> to vector<4x32xf32>
    %205 = arith.negf %204 : vector<4x32xf32>
    %206 = math.exp %205 : vector<4x32xf32>
    %cst_61 = arith.constant 1.000000e+00 : f32
    %207 = vector.broadcast %cst_61 : f32 to vector<4x32xf32>
    %208 = arith.addf %207, %206 : vector<4x32xf32>
    %209 = arith.divf %207, %208 : vector<4x32xf32>
    %210 = vector.extract_strided_slice %203 {offsets = [0, 32], sizes = [4, 32], strides = [1, 1]} : vector<4x128xf32> to vector<4x32xf32>
    %211 = arith.negf %210 : vector<4x32xf32>
    %212 = math.exp %211 : vector<4x32xf32>
    %cst_62 = arith.constant 1.000000e+00 : f32
    %213 = vector.broadcast %cst_62 : f32 to vector<4x32xf32>
    %214 = arith.addf %213, %212 : vector<4x32xf32>
    %215 = arith.divf %213, %214 : vector<4x32xf32>
    %216 = vector.extract_strided_slice %203 {offsets = [0, 64], sizes = [4, 32], strides = [1, 1]} : vector<4x128xf32> to vector<4x32xf32>
    %217 = math.tanh %216 : vector<4x32xf32>
    %218 = vector.extract_strided_slice %203 {offsets = [0, 96], sizes = [4, 32], strides = [1, 1]} : vector<4x128xf32> to vector<4x32xf32>
    %219 = arith.negf %218 : vector<4x32xf32>
    %220 = math.exp %219 : vector<4x32xf32>
    %cst_63 = arith.constant 1.000000e+00 : f32
    %221 = vector.broadcast %cst_63 : f32 to vector<4x32xf32>
    %222 = arith.addf %221, %220 : vector<4x32xf32>
    %223 = arith.divf %221, %222 : vector<4x32xf32>
    %224 = arith.mulf %215, %190 : vector<4x32xf32>
    %225 = arith.mulf %209, %217 : vector<4x32xf32>
    %226 = arith.addf %224, %225 : vector<4x32xf32>
    %227 = math.tanh %226 : vector<4x32xf32>
    %228 = arith.mulf %223, %227 : vector<4x32xf32>
    %c5_64 = arith.constant 5 : index
    %c0_65 = arith.constant 0 : index
    %c0_66 = arith.constant 0 : index
    %229 = vector.load %arg3[%c5_64, %c0_65, %c0_66] : memref<8x4x32xf32, #tpu.memory_space<vmem>>, vector<1x4x32xf32>
    %230 = vector.shape_cast %229 : vector<1x4x32xf32> to vector<4x32xf32>
    %231 = vector.shape_cast %228 : vector<4x32xf32> to vector<1x4x32xf32>
    tpu.vector_store %arg3[%c5_64, %c0_65, %c0_66], %231 {strides = array<i32>} : memref<8x4x32xf32, #tpu.memory_space<vmem>>, vector<1x4x32xf32>,
    %232 = tpu.concatenate %228, %228 in 1 : vector<4x32xf32>, vector<4x32xf32> -> vector<4x64xf32>
    %cst_67 = arith.constant 0.000000e+00 : f32
    %233 = vector.broadcast %cst_67 : f32 to vector<4x64xf32>
    %234 = arith.select %15, %232, %233 : vector<4x64xi1>, vector<4x64xf32>
    %c6 = arith.constant 6 : index
    %c0_68 = arith.constant 0 : index
    %c0_69 = arith.constant 0 : index
    %235 = vector.load %arg1[%c6, %c0_68, %c0_69] : memref<8x4x128xf32, #tpu.memory_space<vmem>>, vector<1x4x128xf32>
    %236 = vector.shape_cast %235 : vector<1x4x128xf32> to vector<4x128xf32>
    %237 = arith.truncf %234 : vector<4x64xf32> to vector<4x64xbf16>
    %cst_70 = arith.constant dense<0.000000e+00> : vector<4x128xf32>
    %238 = tpu.matmul %237, %18, %cst_70 {dimension_numbers = #tpu.dot_dimension_numbers<[1], [0], [0], [1], [0, 0, 1, 1], [], []>} : vector<4x64xbf16>, vector<64x128xbf16>, vector<4x128xf32> -> vector<4x128xf32>
    %239 = arith.addf %236, %238 : vector<4x128xf32>
    %240 = vector.extract_strided_slice %239 {offsets = [0, 0], sizes = [4, 32], strides = [1, 1]} : vector<4x128xf32> to vector<4x32xf32>
    %241 = arith.negf %240 : vector<4x32xf32>
    %242 = math.exp %241 : vector<4x32xf32>
    %cst_71 = arith.constant 1.000000e+00 : f32
    %243 = vector.broadcast %cst_71 : f32 to vector<4x32xf32>
    %244 = arith.addf %243, %242 : vector<4x32xf32>
    %245 = arith.divf %243, %244 : vector<4x32xf32>
    %246 = vector.extract_strided_slice %239 {offsets = [0, 32], sizes = [4, 32], strides = [1, 1]} : vector<4x128xf32> to vector<4x32xf32>
    %247 = arith.negf %246 : vector<4x32xf32>
    %248 = math.exp %247 : vector<4x32xf32>
    %cst_72 = arith.constant 1.000000e+00 : f32
    %249 = vector.broadcast %cst_72 : f32 to vector<4x32xf32>
    %250 = arith.addf %249, %248 : vector<4x32xf32>
    %251 = arith.divf %249, %250 : vector<4x32xf32>
    %252 = vector.extract_strided_slice %239 {offsets = [0, 64], sizes = [4, 32], strides = [1, 1]} : vector<4x128xf32> to vector<4x32xf32>
    %253 = math.tanh %252 : vector<4x32xf32>
    %254 = vector.extract_strided_slice %239 {offsets = [0, 96], sizes = [4, 32], strides = [1, 1]} : vector<4x128xf32> to vector<4x32xf32>
    %255 = arith.negf %254 : vector<4x32xf32>
    %256 = math.exp %255 : vector<4x32xf32>
    %cst_73 = arith.constant 1.000000e+00 : f32
    %257 = vector.broadcast %cst_73 : f32 to vector<4x32xf32>
    %258 = arith.addf %257, %256 : vector<4x32xf32>
    %259 = arith.divf %257, %258 : vector<4x32xf32>
    %260 = arith.mulf %251, %226 : vector<4x32xf32>
    %261 = arith.mulf %245, %253 : vector<4x32xf32>
    %262 = arith.addf %260, %261 : vector<4x32xf32>
    %263 = math.tanh %262 : vector<4x32xf32>
    %264 = arith.mulf %259, %263 : vector<4x32xf32>
    %c6_74 = arith.constant 6 : index
    %c0_75 = arith.constant 0 : index
    %c0_76 = arith.constant 0 : index
    %265 = vector.load %arg3[%c6_74, %c0_75, %c0_76] : memref<8x4x32xf32, #tpu.memory_space<vmem>>, vector<1x4x32xf32>
    %266 = vector.shape_cast %265 : vector<1x4x32xf32> to vector<4x32xf32>
    %267 = vector.shape_cast %264 : vector<4x32xf32> to vector<1x4x32xf32>
    tpu.vector_store %arg3[%c6_74, %c0_75, %c0_76], %267 {strides = array<i32>} : memref<8x4x32xf32, #tpu.memory_space<vmem>>, vector<1x4x32xf32>,
    %268 = tpu.concatenate %264, %264 in 1 : vector<4x32xf32>, vector<4x32xf32> -> vector<4x64xf32>
    %cst_77 = arith.constant 0.000000e+00 : f32
    %269 = vector.broadcast %cst_77 : f32 to vector<4x64xf32>
    %270 = arith.select %15, %268, %269 : vector<4x64xi1>, vector<4x64xf32>
    %c7 = arith.constant 7 : index
    %c0_78 = arith.constant 0 : index
    %c0_79 = arith.constant 0 : index
    %271 = vector.load %arg1[%c7, %c0_78, %c0_79] : memref<8x4x128xf32, #tpu.memory_space<vmem>>, vector<1x4x128xf32>
    %272 = vector.shape_cast %271 : vector<1x4x128xf32> to vector<4x128xf32>
    %273 = arith.truncf %270 : vector<4x64xf32> to vector<4x64xbf16>
    %cst_80 = arith.constant dense<0.000000e+00> : vector<4x128xf32>
    %274 = tpu.matmul %273, %18, %cst_80 {dimension_numbers = #tpu.dot_dimension_numbers<[1], [0], [0], [1], [0, 0, 1, 1], [], []>} : vector<4x64xbf16>, vector<64x128xbf16>, vector<4x128xf32> -> vector<4x128xf32>
    %275 = arith.addf %272, %274 : vector<4x128xf32>
    %276 = vector.extract_strided_slice %275 {offsets = [0, 0], sizes = [4, 32], strides = [1, 1]} : vector<4x128xf32> to vector<4x32xf32>
    %277 = arith.negf %276 : vector<4x32xf32>
    %278 = math.exp %277 : vector<4x32xf32>
    %cst_81 = arith.constant 1.000000e+00 : f32
    %279 = vector.broadcast %cst_81 : f32 to vector<4x32xf32>
    %280 = arith.addf %279, %278 : vector<4x32xf32>
    %281 = arith.divf %279, %280 : vector<4x32xf32>
    %282 = vector.extract_strided_slice %275 {offsets = [0, 32], sizes = [4, 32], strides = [1, 1]} : vector<4x128xf32> to vector<4x32xf32>
    %283 = arith.negf %282 : vector<4x32xf32>
    %284 = math.exp %283 : vector<4x32xf32>
    %cst_82 = arith.constant 1.000000e+00 : f32
    %285 = vector.broadcast %cst_82 : f32 to vector<4x32xf32>
    %286 = arith.addf %285, %284 : vector<4x32xf32>
    %287 = arith.divf %285, %286 : vector<4x32xf32>
    %288 = vector.extract_strided_slice %275 {offsets = [0, 64], sizes = [4, 32], strides = [1, 1]} : vector<4x128xf32> to vector<4x32xf32>
    %289 = math.tanh %288 : vector<4x32xf32>
    %290 = vector.extract_strided_slice %275 {offsets = [0, 96], sizes = [4, 32], strides = [1, 1]} : vector<4x128xf32> to vector<4x32xf32>
    %291 = arith.negf %290 : vector<4x32xf32>
    %292 = math.exp %291 : vector<4x32xf32>
    %cst_83 = arith.constant 1.000000e+00 : f32
    %293 = vector.broadcast %cst_83 : f32 to vector<4x32xf32>
    %294 = arith.addf %293, %292 : vector<4x32xf32>
    %295 = arith.divf %293, %294 : vector<4x32xf32>
    %296 = arith.mulf %287, %262 : vector<4x32xf32>
    %297 = arith.mulf %281, %289 : vector<4x32xf32>
    %298 = arith.addf %296, %297 : vector<4x32xf32>
    %299 = math.tanh %298 : vector<4x32xf32>
    %300 = arith.mulf %295, %299 : vector<4x32xf32>
    %c7_84 = arith.constant 7 : index
    %c0_85 = arith.constant 0 : index
    %c0_86 = arith.constant 0 : index
    %301 = vector.load %arg3[%c7_84, %c0_85, %c0_86] : memref<8x4x32xf32, #tpu.memory_space<vmem>>, vector<1x4x32xf32>
    %302 = vector.shape_cast %301 : vector<1x4x32xf32> to vector<4x32xf32>
    %303 = vector.shape_cast %300 : vector<4x32xf32> to vector<1x4x32xf32>
    tpu.vector_store %arg3[%c7_84, %c0_85, %c0_86], %303 {strides = array<i32>} : memref<8x4x32xf32, #tpu.memory_space<vmem>>, vector<1x4x32xf32>,
    %304 = tpu.concatenate %300, %300 in 1 : vector<4x32xf32>, vector<4x32xf32> -> vector<4x64xf32>
    %cst_87 = arith.constant 0.000000e+00 : f32
    %305 = vector.broadcast %cst_87 : f32 to vector<4x64xf32>
    %306 = arith.select %15, %304, %305 : vector<4x64xi1>, vector<4x64xf32>
    %c0_88 = arith.constant 0 : index
    %c0_89 = arith.constant 0 : index
    %307 = vector.load %arg4[%c0_88, %c0_89] : memref<4x64xf32, #tpu.memory_space<vmem>>, vector<4x64xf32>
    tpu.vector_store %arg4[%c0_88, %c0_89], %306 {strides = array<i32>} : memref<4x64xf32, #tpu.memory_space<vmem>>, vector<4x64xf32>,
    %c0_90 = arith.constant 0 : index
    %c0_91 = arith.constant 0 : index
    %308 = vector.load %arg5[%c0_90, %c0_91] : memref<4x32xf32, #tpu.memory_space<vmem>>, vector<4x32xf32>
    tpu.vector_store %arg5[%c0_90, %c0_91], %298 {strides = array<i32>} : memref<4x32xf32, #tpu.memory_space<vmem>>, vector<4x32xf32>,
    return
  }
  func.func @transform_0(%arg0: i32) -> (i32, i32, i32) {
    %c0_i32 = arith.constant 0 : i32
    %c0_i32_0 = arith.constant 0 : i32
    %c0_i32_1 = arith.constant 0 : i32
    return %arg0, %c0_i32, %c0_i32_0 : i32, i32, i32
  }
  func.func @transform_1(%arg0: i32) -> (i32, i32) {
    %c0_i32 = arith.constant 0 : i32
    %c0_i32_0 = arith.constant 0 : i32
    %c0_i32_1 = arith.constant 0 : i32
    return %c0_i32, %c0_i32_0 : i32, i32
  }
  func.func @transform_2(%arg0: i32) -> (i32, i32, i32) {
    %c0_i32 = arith.constant 0 : i32
    %c0_i32_0 = arith.constant 0 : i32
    %c0_i32_1 = arith.constant 0 : i32
    return %arg0, %c0_i32, %c0_i32_0 : i32, i32, i32
  }
}

</mosaic_0001>

<llo_original>
// kernel: pblstm_forward.2
$region0: #{pblstm_forward.2}
  #allocation0 [shape = 'u32[]', space=smem, size = 0x4, offset = 0x4, fixed_abs, tag = 'smem constant byte address 0x4 - core index']
  #allocation1 [shape = 'u32[144,128]{1,0:T(1,128)}', space=vmem, size = 0x12000, scoped, tag = 'internal scratch']
  %s0 = inlined_call_operand.vmem [shape: bf16[16,16], index: 0, kind: input, shape index: {}]
  %s1 = inlined_call_operand.vmem [shape: bf16[16,256], index: 1, kind: input, shape index: {}]
  %s2 = inlined_call_operand.vmem [shape: f32[1,256], index: 2, kind: input, shape index: {}]
  %s3 = inlined_call_operand.vmem [shape: f32[16,256], index: 3, kind: output, shape index: {}]
  %s4 = sld [smem:[#allocation0]]
  $region22: #{pblstm_forward.2} parent=0
    _
  %s6 = ssub.s32 1, %s4
  %s7 = scalar_select 0, %s6, %s4
  // Predicated region
  $region2: #{pblstm_forward.2} parent=0 // pred_check
    _
  $region3: #{pblstm_forward.2} parent=0 // pred_check_branch
    %9 = sbr.rel (0) target = $region5
  $region4: #{pblstm_forward.2} parent=0 // pred_region
    _
  $region5: #{pblstm_forward.2} parent=0 // pred_fallthru
    _
  // Predicated region
  $region6: #{pblstm_forward.2} parent=0 // pred_check
    _
  $region7: #{pblstm_forward.2} parent=0 // pred_check_branch
    %11 = sbr.rel (0) target = $region9
  $region8: #{pblstm_forward.2} parent=0 // pred_region
    _
  $region9: #{pblstm_forward.2} parent=0 // pred_fallthru
    _
  // Predicated region
  $region10: #{pblstm_forward.2} parent=0 // pred_check
    _
  $region11: #{pblstm_forward.2} parent=0 // pred_check_branch
    %13 = sbr.rel (0) target = $region13
  $region12: #{pblstm_forward.2} parent=0 // pred_region
    _
  $region13: #{pblstm_forward.2} parent=0 // pred_fallthru
    _
  %v15 = vld [vmem:[%s0] sm:$0xf]
  %v16 = vld [vmem:[%s0 + $0x4] sm:$0xf]
  %v17 = vld [vmem:[%s1] sm:$0xff]
  %v18 = vld [vmem:[%s1 + $0x8] sm:$0xff]
  %v19 = vld [vmem:[%s2] sm:$0x3]
  %v21 = vlaneseq
  %v22 = vshrl.u32 %v21, 7
  %v23 = vsub.s32 0, %v22
  %v24 = vrot.slane %v19, %v23
  %v25 = vlaneseq
  %v26 = vshrl.u32 %v25, 7
  %v27 = vsub.s32 1, %v26
  %v28 = vrot.slane %v19, %v27
  %v33 = vunpack.c.l.b16 %v15
  %v34 = vunpack.c.l.b16 %v16
  %v35 = vpack.c.b16 %v34, %v33
  %v38 = vunpack.c.l.b16 %v17
  %v39 = vunpack.c.h.b16 %v17
  %v40 = vunpack.c.l.b16 %v18
  %v41 = vunpack.c.h.b16 %v18
  %v42 = vpack.c.b16 %v40, %v38
  %v43 = vpack.c.b16 %v41, %v39
  %vm46 = vcmask 130048
  %v48 = vsel %vm46, %v35, 0
  %50 = vmatprep.subr.bf16.mxu0 %v43
  %51 = vmatpush1.bf16.msra.mxu0 %v42
  %52 = vmatprep.subr.bf16.mxu0 0
  %53 = vmatpush1.bf16.msra.mxu0 0
  %54 = vmatprep.subr.bf16.mxu0 0
  %55 = vmatpush1.bf16.msra.mxu0 0
  %56 = vmatprep.subr.bf16.mxu0 0
  %57 = vmatpush1.bf16.msra.mxu0 0
  %58 = vmatprep.subr.bf16.mxu0 0
  %59 = vmatpush1.bf16.msra.mxu0 0
  %60 = vmatprep.subr.bf16.mxu0 0
  %61 = vmatpush1.bf16.msra.mxu0 0
  %62 = vmatprep.subr.bf16.mxu0 0
  %63 = vmatpush1.bf16.msra.mxu0 0
  %64 = vmatprep.subr.bf16.mxu0 0
  %65 = vmatpush1.bf16.msra.mxu0 0
  %66 = vmatprep.subr.bf16.mxu0 0
  %67 = vmatpush1.bf16.msra.mxu0 0
  %68 = vmatprep.subr.bf16.mxu0 0
  %69 = vmatpush1.bf16.msra.mxu0 0
  %70 = vmatprep.subr.bf16.mxu0 0
  %71 = vmatpush1.bf16.msra.mxu0 0
  %72 = vmatprep.subr.bf16.mxu0 0
  %73 = vmatpush1.bf16.msra.mxu0 0
  %74 = vmatprep.subr.bf16.mxu0 0
  %75 = vmatpush1.bf16.msra.mxu0 0
  %76 = vmatprep.subr.bf16.mxu0 0
  %77 = vmatpush1.bf16.msra.mxu0 0
  %78 = vmatprep.subr.bf16.mxu0 0
  %79 = vmatpush1.bf16.msra.mxu0 0
  %80 = vmatprep.subr.bf16.mxu0 0
  %81 = vmatpush1.bf16.msra.mxu0 0
  %82 = vmatprep.mubr.bf16.mxu0 0
  %83 = vmatmul.mubr.bf16.gmra.mrb[0].mxu0 %v48
  %v84 = vpop.f32.mrb[0].mxu0
  %v85 = vadd.f32 %v24, %v84
  %v86 = vpop.f32.mrb[0].mxu0
  %v87 = vadd.f32 %v28, %v86
  %v88 = vpop.f32.mrb[0].mxu0
  %v89 = vadd.f32 %v24, %v88
  %v90 = vpop.f32.mrb[0].mxu0
  %v91 = vadd.f32 %v28, %v90
  %92 = vdwg.mxu0
  %93 = vst [vmem:[%s3] sm:$0xff] %v85
  %94 = vst [vmem:[%s3 + $0x8] sm:$0xff] %v87
  %95 = vst [vmem:[%s3 + $0x10] sm:$0xff] %v89
  %96 = vst [vmem:[%s3 + $0x18] sm:$0xff] %v91
  // Predicated region
  $region14: #{pblstm_forward.2} parent=0 // pred_check
    _
  $region15: #{pblstm_forward.2} parent=0 // pred_check_branch
    %98 = sbr.rel (0) target = $region17
  $region16: #{pblstm_forward.2} parent=0 // pred_region
    _
  $region17: #{pblstm_forward.2} parent=0 // pred_fallthru
    _
  // Predicated region
  $region18: #{pblstm_forward.2} parent=0 // pred_check
    _
  $region19: #{pblstm_forward.2} parent=0 // pred_check_branch
    %100 = sbr.rel (0) target = $region21
  $region20: #{pblstm_forward.2} parent=0 // pred_region
    _
  $region21: #{pblstm_forward.2} parent=0 // pred_fallthru
    _

// kernel: pblstm_forward.3
$region0: #{pblstm_forward.3}
  #allocation0 [shape = 'u32[]', space=smem, size = 0x4, offset = 0x4, fixed_abs, tag = 'smem constant byte address 0x4 - core index']
  #allocation1 [shape = 'u32[144,128]{1,0:T(1,128)}', space=vmem, size = 0x12000, scoped, tag = 'internal scratch']
  #allocation2 [shape = 'f32[4,64]{1,0:T(4,128)}', space=vmem, size = 0x800, scoped, tag = 'scratch operand']
  #allocation3 [shape = 'f32[4,32]{1,0:T(4,128)}', space=vmem, size = 0x800, scoped, tag = 'scratch operand']
  %s0 = inlined_call_operand.vmem [shape: f32[8,4,128], index: 0, kind: input, shape index: {}]
  %s1 = inlined_call_operand.vmem [shape: bf16[64,128], index: 1, kind: input, shape index: {}]
  %s2 = inlined_call_operand.vmem [shape: f32[8,4,32], index: 2, kind: output, shape index: {}]
  %s3 = sld [smem:[#allocation0]]
  $region22: #{pblstm_forward.3} parent=0
    _
  %s5 = ssub.s32 1, %s3
  %s6 = scalar_select 0, %s5, %s3
  // Predicated region
  $region2: #{pblstm_forward.3} parent=0 // pred_check
    _
  $region3: #{pblstm_forward.3} parent=0 // pred_check_branch
    %8 = sbr.rel (0) target = $region5
  $region4: #{pblstm_forward.3} parent=0 // pred_region
    _
  $region5: #{pblstm_forward.3} parent=0 // pred_fallthru
    _
  // Predicated region
  $region6: #{pblstm_forward.3} parent=0 // pred_check
    _
  $region7: #{pblstm_forward.3} parent=0 // pred_check_branch
    %10 = sbr.rel (0) target = $region9
  $region8: #{pblstm_forward.3} parent=0 // pred_region
    _
  $region9: #{pblstm_forward.3} parent=0 // pred_fallthru
    _
  %p12 = scmp.eq.s32.totalorder 0, 0
  // Predicated region
  $region10: #{pblstm_forward.3} parent=0 // pred_check
    %p13 = pneg %p12
  $region11: #{pblstm_forward.3} parent=0 // pred_check_branch
    %15 = sbr.rel (%p13) target = $region13
  $region12: #{pblstm_forward.3} parent=0 // pred_region
    %vm16 = vcmask 519168
    %17 = vst.msk [vmem:[#allocation2] sm:$0xf] %vm16, 0.0
    %vm18 = vcmask 257024
    %19 = vst.msk [vmem:[#allocation3] sm:$0xf] %vm18, 0.0
  $region13: #{pblstm_forward.3} parent=0 // pred_fallthru
    _
  %v20 = vlaneseq
  %v21 = vshrl.u32 %v20, 7
  %v22 = vlaneseq
  %v23 = vand.u32 %v22, 127
  %vm24 = vcmp.lt.s32.totalorder %v21, 2
  %vm25 = vcmp.lt.s32.totalorder %v23, 32
  %vm26 = vmand %vm24, %vm25
  %vm27 = vcmp.ge.s32.totalorder %v21, 2
  %vm28 = vcmp.ge.s32.totalorder %v23, 32
  %vm29 = vmand %vm27, %vm28
  %vm30 = vmor %vm26, %vm29
  %v31 = vld [vmem:[#allocation2] sm:$0xf]
  %v32 = vld [vmem:[#allocation3] sm:$0xf]
  %v33 = vld [vmem:[%s1] sm:$0xf]
  %v34 = vld [vmem:[%s1 + $0x4] sm:$0xf]
  %v35 = vld [vmem:[%s1 + $0x8] sm:$0xf]
  %v36 = vld [vmem:[%s1 + $0xc] sm:$0xf]
  %v37 = vld [vmem:[%s1 + $0x10] sm:$0xf]
  %v38 = vld [vmem:[%s1 + $0x14] sm:$0xf]
  %v39 = vld [vmem:[%s1 + $0x18] sm:$0xf]
  %v40 = vld [vmem:[%s1 + $0x1c] sm:$0xf]
  %v41 = vld [vmem:[%s0] sm:$0xf]
  %v42 = vpack.c.bf16 %v31, %v31
  %v51 = vunpack.c.l.b16 %v33
  %v52 = vunpack.c.l.b16 %v34
  %v53 = vunpack.c.l.b16 %v35
  %v54 = vunpack.c.l.b16 %v36
  %v55 = vunpack.c.l.b16 %v37
  %v56 = vunpack.c.l.b16 %v38
  %v57 = vunpack.c.l.b16 %v39
  %v58 = vunpack.c.l.b16 %v40
  %v59 = vpack.c.b16 %v52, %v51
  %v60 = vpack.c.b16 %v54, %v53
  %v61 = vpack.c.b16 %v56, %v55
  %v62 = vpack.c.b16 %v58, %v57
  %vm67 = vcmask 523264
  %v69 = vsel %vm67, %v42, 0
  %71 = vmatprep.subr.bf16.mxu0 0
  %72 = vmatpush1.bf16.msra.mxu0 %v59
  %73 = vmatprep.subr.bf16.mxu0 0
  %74 = vmatpush1.bf16.msra.mxu0 %v60
  %75 = vmatprep.subr.bf16.mxu0 0
  %76 = vmatpush1.bf16.msra.mxu0 %v61
  %77 = vmatprep.subr.bf16.mxu0 0
  %78 = vmatpush1.bf16.msra.mxu0 %v62
  %79 = vmatprep.subr.bf16.mxu0 0
  %80 = vmatpush1.bf16.msra.mxu0 0
  %81 = vmatprep.subr.bf16.mxu0 0
  %82 = vmatpush1.bf16.msra.mxu0 0
  %83 = vmatprep.subr.bf16.mxu0 0
  %84 = vmatpush1.bf16.msra.mxu0 0
  %85 = vmatprep.subr.bf16.mxu0 0
  %86 = vmatpush1.bf16.msra.mxu0 0
  %87 = vmatprep.subr.bf16.mxu0 0
  %88 = vmatpush1.bf16.msra.mxu0 0
  %89 = vmatprep.subr.bf16.mxu0 0
  %90 = vmatpush1.bf16.msra.mxu0 0
  %91 = vmatprep.subr.bf16.mxu0 0
  %92 = vmatpush1.bf16.msra.mxu0 0
  %93 = vmatprep.subr.bf16.mxu0 0
  %94 = vmatpush1.bf16.msra.mxu0 0
  %95 = vmatprep.subr.bf16.mxu0 0
  %96 = vmatpush1.bf16.msra.mxu0 0
  %97 = vmatprep.subr.bf16.mxu0 0
  %98 = vmatpush1.bf16.msra.mxu0 0
  %99 = vmatprep.subr.bf16.mxu0 0
  %100 = vmatpush1.bf16.msra.mxu0 0
  %101 = vmatprep.subr.bf16.mxu0 0
  %102 = vmatpush1.bf16.msra.mxu0 0
  %103 = vmatprep.mubr.bf16.mxu0 0
  %104 = vmatmul.mubr.bf16.gmra.mrb[0].mxu0 %v69
  %v105 = vpop.f32.mrb[0].mxu0
  %v106 = vadd.f32 0.0, %v105
  %v107 = vpop.f32.mrb[0].mxu0
  %v108 = vpop.f32.mrb[0].mxu0
  %v109 = vpop.f32.mrb[0].mxu0
  %110 = vdwg.mxu0
  %v111 = vadd.f32 %v41, %v106
  %v112 = vxor.u32 %v111, 2147483648
  %v113 = vmul.f32 %v112, 1.442695
  %v114 = vpow.pop %v113
  %v115 = vadd.f32 %v114, 1.0
  %v116 = vrcp.pop %v115
  %v117 = vmul.f32 1.0, %v116
  %v118 = vtanh.pop %v111
  %120 = vrot.lane.b32.xlu0 %v32, 32
  %v121 = vpop.permute.xlu0 %120
  %v123 = vmul.f32 %v117, %v121
  %125 = vrot.lane.b32.xlu0 %v118, 64
  %v126 = vpop.permute.xlu0 %125
  %v128 = vmul.f32 %v117, %v126
  %130 = vrot.lane.b32.xlu0 %v128, 32
  %v131 = vpop.permute.xlu0 %130
  %v133 = vadd.f32 %v123, %v131
  %v134 = vtanh.pop %v133
  %136 = vrot.lane.b32.xlu0 %v134, 64
  %v137 = vpop.permute.xlu0 %136
  %v139 = vmul.f32 %v117, %v137
  %141 = vrot.lane.b32.xlu0 %v139, 32
  %v142 = vpop.permute.xlu0 %141
  %vm144 = vcmask 257024
  %145 = vst.msk [vmem:[%s2] sm:$0xf] %vm144, %v142
  %146 = vrot.lane.b32.xlu0 %v139, 64
  %v147 = vpop.permute.xlu0 %146
  %vm149 = vcmask 261120
  %v150 = vsel %vm149, %v142, %v147
  %v151 = vsel %vm30, %v150, 0.0
  %s152 = scalar_lea.vmem %s0, 4
  %v153 = vld [vmem:[%s152] sm:$0xf]
  %v154 = vpack.c.bf16 %v151, %v151
  %v156 = vsel %vm67, %v154, 0
  %158 = vmatprep.subr.bf16.mxu0 0
  %159 = vmatpush1.bf16.msra.mxu0 %v59
  %160 = vmatprep.subr.bf16.mxu0 0
  %161 = vmatpush1.bf16.msra.mxu0 %v60
  %162 = vmatprep.subr.bf16.mxu0 0
  %163 = vmatpush1.bf16.msra.mxu0 %v61
  %164 = vmatprep.subr.bf16.mxu0 0
  %165 = vmatpush1.bf16.msra.mxu0 %v62
  %166 = vmatprep.subr.bf16.mxu0 0
  %167 = vmatpush1.bf16.msra.mxu0 0
  %168 = vmatprep.subr.bf16.mxu0 0
  %169 = vmatpush1.bf16.msra.mxu0 0
  %170 = vmatprep.subr.bf16.mxu0 0
  %171 = vmatpush1.bf16.msra.mxu0 0
  %172 = vmatprep.subr.bf16.mxu0 0
  %173 = vmatpush1.bf16.msra.mxu0 0
  %174 = vmatprep.subr.bf16.mxu0 0
  %175 = vmatpush1.bf16.msra.mxu0 0
  %176 = vmatprep.subr.bf16.mxu0 0
  %177 = vmatpush1.bf16.msra.mxu0 0
  %178 = vmatprep.subr.bf16.mxu0 0
  %179 = vmatpush1.bf16.msra.mxu0 0
  %180 = vmatprep.subr.bf16.mxu0 0
  %181 = vmatpush1.bf16.msra.mxu0 0
  %182 = vmatprep.subr.bf16.mxu0 0
  %183 = vmatpush1.bf16.msra.mxu0 0
  %184 = vmatprep.subr.bf16.mxu0 0
  %185 = vmatpush1.bf16.msra.mxu0 0
  %186 = vmatprep.subr.bf16.mxu0 0
  %187 = vmatpush1.bf16.msra.mxu0 0
  %188 = vmatprep.subr.bf16.mxu0 0
  %189 = vmatpush1.bf16.msra.mxu0 0
  %190 = vmatprep.mubr.bf16.mxu0 0
  %191 = vmatmul.mubr.bf16.gmra.mrb[0].mxu0 %v156
  %v192 = vpop.f32.mrb[0].mxu0
  %v193 = vadd.f32 0.0, %v192
  %v194 = vpop.f32.mrb[0].mxu0
  %v195 = vpop.f32.mrb[0].mxu0
  %v196 = vpop.f32.mrb[0].mxu0
  %197 = vdwg.mxu0
  %v198 = vadd.f32 %v153, %v193
  %v199 = vxor.u32 %v198, 2147483648
  %v200 = vmul.f32 %v199, 1.442695
  %v201 = vpow.pop %v200
  %v202 = vadd.f32 %v201, 1.0
  %v203 = vrcp.pop %v202
  %v204 = vmul.f32 1.0, %v203
  %v205 = vtanh.pop %v198
  %v206 = vmul.f32 %v204, %v133
  %208 = vrot.lane.b32.xlu0 %v205, 64
  %v209 = vpop.permute.xlu0 %208
  %v211 = vmul.f32 %v204, %v209
  %213 = vrot.lane.b32.xlu0 %v211, 32
  %v214 = vpop.permute.xlu0 %213
  %v216 = vadd.f32 %v206, %v214
  %v217 = vtanh.pop %v216
  %219 = vrot.lane.b32.xlu0 %v217, 64
  %v220 = vpop.permute.xlu0 %219
  %v222 = vmul.f32 %v204, %v220
  %224 = vrot.lane.b32.xlu0 %v222, 32
  %v225 = vpop.permute.xlu0 %224
  %s227 = scalar_lea.vmem %s2, 4
  %228 = vst.msk [vmem:[%s227] sm:$0xf] %vm144, %v225
  %229 = vrot.lane.b32.xlu0 %v222, 64
  %v230 = vpop.permute.xlu0 %229
  %v232 = vsel %vm149, %v225, %v230
  %v233 = vsel %vm30, %v232, 0.0
  %s234 = scalar_lea.vmem %s0, 8
  %v235 = vld [vmem:[%s234] sm:$0xf]
  %v236 = vpack.c.bf16 %v233, %v233
  %v238 = vsel %vm67, %v236, 0
  %240 = vmatprep.subr.bf16.mxu0 0
  %241 = vmatpush1.bf16.msra.mxu0 %v59
  %242 = vmatprep.subr.bf16.mxu0 0
  %243 = vmatpush1.bf16.msra.mxu0 %v60
  %244 = vmatprep.subr.bf16.mxu0 0
  %245 = vmatpush1.bf16.msra.mxu0 %v61
  %246 = vmatprep.subr.bf16.mxu0 0
  %247 = vmatpush1.bf16.msra.mxu0 %v62
  %248 = vmatprep.subr.bf16.mxu0 0
  %249 = vmatpush1.bf16.msra.mxu0 0
  %250 = vmatprep.subr.bf16.mxu0 0
  %251 = vmatpush1.bf16.msra.mxu0 0
  %252 = vmatprep.subr.bf16.mxu0 0
  %253 = vmatpush1.bf16.msra.mxu0 0
  %254 = vmatprep.subr.bf16.mxu0 0
  %255 = vmatpush1.bf16.msra.mxu0 0
  %256 = vmatprep.subr.bf16.mxu0 0
  %257 = vmatpush1.bf16.msra.mxu0 0
  %258 = vmatprep.subr.bf16.mxu0 0
  %259 = vmatpush1.bf16.msra.mxu0 0
  %260 = vmatprep.subr.bf16.mxu0 0
  %261 = vmatpush1.bf16.msra.mxu0 0
  %262 = vmatprep.subr.bf16.mxu0 0
  %263 = vmatpush1.bf16.msra.mxu0 0
  %264 = vmatprep.subr.bf16.mxu0 0
  %265 = vmatpush1.bf16.msra.mxu0 0
  %266 = vmatprep.subr.bf16.mxu0 0
  %267 = vmatpush1.bf16.msra.mxu0 0
  %268 = vmatprep.subr.bf16.mxu0 0
  %269 = vmatpush1.bf16.msra.mxu0 0
  %270 = vmatprep.subr.bf16.mxu0 0
  %271 = vmatpush1.bf16.msra.mxu0 0
  %272 = vmatprep.mubr.bf16.mxu0 0
  %273 = vmatmul.mubr.bf16.gmra.mrb[0].mxu0 %v238
  %v274 = vpop.f32.mrb[0].mxu0
  %v275 = vadd.f32 0.0, %v274
  %v276 = vpop.f32.mrb[0].mxu0
  %v277 = vpop.f32.mrb[0].mxu0
  %v278 = vpop.f32.mrb[0].mxu0
  %279 = vdwg.mxu0
  %v280 = vadd.f32 %v235, %v275
  %v281 = vxor.u32 %v280, 2147483648
  %v282 = vmul.f32 %v281, 1.442695
  %v283 = vpow.pop %v282
  %v284 = vadd.f32 %v283, 1.0
  %v285 = vrcp.pop %v284
  %v286 = vmul.f32 1.0, %v285
  %v287 = vtanh.pop %v280
  %v288 = vmul.f32 %v286, %v216
  %290 = vrot.lane.b32.xlu0 %v287, 64
  %v291 = vpop.permute.xlu0 %290
  %v293 = vmul.f32 %v286, %v291
  %295 = vrot.lane.b32.xlu0 %v293, 32
  %v296 = vpop.permute.xlu0 %295
  %v298 = vadd.f32 %v288, %v296
  %v299 = vtanh.pop %v298
  %301 = vrot.lane.b32.xlu0 %v299, 64
  %v302 = vpop.permute.xlu0 %301
  %v304 = vmul.f32 %v286, %v302
  %306 = vrot.lane.b32.xlu0 %v304, 32
  %v307 = vpop.permute.xlu0 %306
  %s309 = scalar_lea.vmem %s2, 8
  %310 = vst.msk [vmem:[%s309] sm:$0xf] %vm144, %v307
  %311 = vrot.lane.b32.xlu0 %v304, 64
  %v312 = vpop.permute.xlu0 %311
  %v314 = vsel %vm149, %v307, %v312
  %v315 = vsel %vm30, %v314, 0.0
  %s316 = scalar_lea.vmem %s0, 12
  %v317 = vld [vmem:[%s316] sm:$0xf]
  %v318 = vpack.c.bf16 %v315, %v315
  %v320 = vsel %vm67, %v318, 0
  %322 = vmatprep.subr.bf16.mxu0 0
  %323 = vmatpush1.bf16.msra.mxu0 %v59
  %324 = vmatprep.subr.bf16.mxu0 0
  %325 = vmatpush1.bf16.msra.mxu0 %v60
  %326 = vmatprep.subr.bf16.mxu0 0
  %327 = vmatpush1.bf16.msra.mxu0 %v61
  %328 = vmatprep.subr.bf16.mxu0 0
  %329 = vmatpush1.bf16.msra.mxu0 %v62
  %330 = vmatprep.subr.bf16.mxu0 0
  %331 = vmatpush1.bf16.msra.mxu0 0
  %332 = vmatprep.subr.bf16.mxu0 0
  %333 = vmatpush1.bf16.msra.mxu0 0
  %334 = vmatprep.subr.bf16.mxu0 0
  %335 = vmatpush1.bf16.msra.mxu0 0
  %336 = vmatprep.subr.bf16.mxu0 0
  %337 = vmatpush1.bf16.msra.mxu0 0
  %338 = vmatprep.subr.bf16.mxu0 0
  %339 = vmatpush1.bf16.msra.mxu0 0
  %340 = vmatprep.subr.bf16.mxu0 0
  %341 = vmatpush1.bf16.msra.mxu0 0
  %342 = vmatprep.subr.bf16.mxu0 0
  %343 = vmatpush1.bf16.msra.mxu0 0
  %344 = vmatprep.subr.bf16.mxu0 0
  %345 = vmatpush1.bf16.msra.mxu0 0
  %346 = vmatprep.subr.bf16.mxu0 0
  %347 = vmatpush1.bf16.msra.mxu0 0
  %348 = vmatprep.subr.bf16.mxu0 0
  %349 = vmatpush1.bf16.msra.mxu0 0
  %350 = vmatprep.subr.bf16.mxu0 0
  %351 = vmatpush1.bf16.msra.mxu0 0
  %352 = vmatprep.subr.bf16.mxu0 0
  %353 = vmatpush1.bf16.msra.mxu0 0
  %354 = vmatprep.mubr.bf16.mxu0 0
  %355 = vmatmul.mubr.bf16.gmra.mrb[0].mxu0 %v320
  %v356 = vpop.f32.mrb[0].mxu0
  %v357 = vadd.f32 0.0, %v356
  %v358 = vpop.f32.mrb[0].mxu0
  %v359 = vpop.f32.mrb[0].mxu0
  %v360 = vpop.f32.mrb[0].mxu0
  %361 = vdwg.mxu0
  %v362 = vadd.f32 %v317, %v357
  %v363 = vxor.u32 %v362, 2147483648
  %v364 = vmul.f32 %v363, 1.442695
  %v365 = vpow.pop %v364
  %v366 = vadd.f32 %v365, 1.0
  %v367 = vrcp.pop %v366
  %v368 = vmul.f32 1.0, %v367
  %v369 = vtanh.pop %v362
  %v370 = vmul.f32 %v368, %v298
  %372 = vrot.lane.b32.xlu0 %v369, 64
  %v373 = vpop.permute.xlu0 %372
  %v375 = vmul.f32 %v368, %v373
  %377 = vrot.lane.b32.xlu0 %v375, 32
  %v378 = vpop.permute.xlu0 %377
  %v380 = vadd.f32 %v370, %v378
  %v381 = vtanh.pop %v380
  %383 = vrot.lane.b32.xlu0 %v381, 64
  %v384 = vpop.permute.xlu0 %383
  %v386 = vmul.f32 %v368, %v384
  %388 = vrot.lane.b32.xlu0 %v386, 32
  %v389 = vpop.permute.xlu0 %388
  %s391 = scalar_lea.vmem %s2, 12
  %392 = vst.msk [vmem:[%s391] sm:$0xf] %vm144, %v389
  %393 = vrot.lane.b32.xlu0 %v386, 64
  %v394 = vpop.permute.xlu0 %393
  %v396 = vsel %vm149, %v389, %v394
  %v397 = vsel %vm30, %v396, 0.0
  %s398 = scalar_lea.vmem %s0, 16
  %v399 = vld [vmem:[%s398] sm:$0xf]
  %v400 = vpack.c.bf16 %v397, %v397
  %v402 = vsel %vm67, %v400, 0
  %404 = vmatprep.subr.bf16.mxu0 0
  %405 = vmatpush1.bf16.msra.mxu0 %v59
  %406 = vmatprep.subr.bf16.mxu0 0
  %407 = vmatpush1.bf16.msra.mxu0 %v60
  %408 = vmatprep.subr.bf16.mxu0 0
  %409 = vmatpush1.bf16.msra.mxu0 %v61
  %410 = vmatprep.subr.bf16.mxu0 0
  %411 = vmatpush1.bf16.msra.mxu0 %v62
  %412 = vmatprep.subr.bf16.mxu0 0
  %413 = vmatpush1.bf16.msra.mxu0 0
  %414 = vmatprep.subr.bf16.mxu0 0
  %415 = vmatpush1.bf16.msra.mxu0 0
  %416 = vmatprep.subr.bf16.mxu0 0
  %417 = vmatpush1.bf16.msra.mxu0 0
  %418 = vmatprep.subr.bf16.mxu0 0
  %419 = vmatpush1.bf16.msra.mxu0 0
  %420 = vmatprep.subr.bf16.mxu0 0
  %421 = vmatpush1.bf16.msra.mxu0 0
  %422 = vmatprep.subr.bf16.mxu0 0
  %423 = vmatpush1.bf16.msra.mxu0 0
  %424 = vmatprep.subr.bf16.mxu0 0
  %425 = vmatpush1.bf16.msra.mxu0 0
  %426 = vmatprep.subr.bf16.mxu0 0
  %427 = vmatpush1.bf16.msra.mxu0 0
  %428 = vmatprep.subr.bf16.mxu0 0
  %429 = vmatpush1.bf16.msra.mxu0 0
  %430 = vmatprep.subr.bf16.mxu0 0
  %431 = vmatpush1.bf16.msra.mxu0 0
  %432 = vmatprep.subr.bf16.mxu0 0
  %433 = vmatpush1.bf16.msra.mxu0 0
  %434 = vmatprep.subr.bf16.mxu0 0
  %435 = vmatpush1.bf16.msra.mxu0 0
  %436 = vmatprep.mubr.bf16.mxu0 0
  %437 = vmatmul.mubr.bf16.gmra.mrb[0].mxu0 %v402
  %v438 = vpop.f32.mrb[0].mxu0
  %v439 = vadd.f32 0.0, %v438
  %v440 = vpop.f32.mrb[0].mxu0
  %v441 = vpop.f32.mrb[0].mxu0
  %v442 = vpop.f32.mrb[0].mxu0
  %443 = vdwg.mxu0
  %v444 = vadd.f32 %v399, %v439
  %v445 = vxor.u32 %v444, 2147483648
  %v446 = vmul.f32 %v445, 1.442695
  %v447 = vpow.pop %v446
  %v448 = vadd.f32 %v447, 1.0
  %v449 = vrcp.pop %v448
  %v450 = vmul.f32 1.0, %v449
  %v451 = vtanh.pop %v444
  %v452 = vmul.f32 %v450, %v380
  %454 = vrot.lane.b32.xlu0 %v451, 64
  %v455 = vpop.permute.xlu0 %454
  %v457 = vmul.f32 %v450, %v455
  %459 = vrot.lane.b32.xlu0 %v457, 32
  %v460 = vpop.permute.xlu0 %459
  %v462 = vadd.f32 %v452, %v460
  %v463 = vtanh.pop %v462
  %465 = vrot.lane.b32.xlu0 %v463, 64
  %v466 = vpop.permute.xlu0 %465
  %v468 = vmul.f32 %v450, %v466
  %470 = vrot.lane.b32.xlu0 %v468, 32
  %v471 = vpop.permute.xlu0 %470
  %s473 = scalar_lea.vmem %s2, 16
  %474 = vst.msk [vmem:[%s473] sm:$0xf] %vm144, %v471
  %475 = vrot.lane.b32.xlu0 %v468, 64
  %v476 = vpop.permute.xlu0 %475
  %v478 = vsel %vm149, %v471, %v476
  %v479 = vsel %vm30, %v478, 0.0
  %s480 = scalar_lea.vmem %s0, 20
  %v481 = vld [vmem:[%s480] sm:$0xf]
  %v482 = vpack.c.bf16 %v479, %v479
  %v484 = vsel %vm67, %v482, 0
  %486 = vmatprep.subr.bf16.mxu0 0
  %487 = vmatpush1.bf16.msra.mxu0 %v59
  %488 = vmatprep.subr.bf16.mxu0 0
  %489 = vmatpush1.bf16.msra.mxu0 %v60
  %490 = vmatprep.subr.bf16.mxu0 0
  %491 = vmatpush1.bf16.msra.mxu0 %v61
  %492 = vmatprep.subr.bf16.mxu0 0
  %493 = vmatpush1.bf16.msra.mxu0 %v62
  %494 = vmatprep.subr.bf16.mxu0 0
  %495 = vmatpush1.bf16.msra.mxu0 0
  %496 = vmatprep.subr.bf16.mxu0 0
  %497 = vmatpush1.bf16.msra.mxu0 0
  %498 = vmatprep.subr.bf16.mxu0 0
  %499 = vmatpush1.bf16.msra.mxu0 0
  %500 = vmatprep.subr.bf16.mxu0 0
  %501 = vmatpush1.bf16.msra.mxu0 0
  %502 = vmatprep.subr.bf16.mxu0 0
  %503 = vmatpush1.bf16.msra.mxu0 0
  %504 = vmatprep.subr.bf16.mxu0 0
  %505 = vmatpush1.bf16.msra.mxu0 0
  %506 = vmatprep.subr.bf16.mxu0 0
  %507 = vmatpush1.bf16.msra.mxu0 0
  %508 = vmatprep.subr.bf16.mxu0 0
  %509 = vmatpush1.bf16.msra.mxu0 0
  %510 = vmatprep.subr.bf16.mxu0 0
  %511 = vmatpush1.bf16.msra.mxu0 0
  %512 = vmatprep.subr.bf16.mxu0 0
  %513 = vmatpush1.bf16.msra.mxu0 0
  %514 = vmatprep.subr.bf16.mxu0 0
  %515 = vmatpush1.bf16.msra.mxu0 0
  %516 = vmatprep.subr.bf16.mxu0 0
  %517 = vmatpush1.bf16.msra.mxu0 0
  %518 = vmatprep.mubr.bf16.mxu0 0
  %519 = vmatmul.mubr.bf16.gmra.mrb[0].mxu0 %v484
  %v520 = vpop.f32.mrb[0].mxu0
  %v521 = vadd.f32 0.0, %v520
  %v522 = vpop.f32.mrb[0].mxu0
  %v523 = vpop.f32.mrb[0].mxu0
  %v524 = vpop.f32.mrb[0].mxu0
  %525 = vdwg.mxu0
  %v526 = vadd.f32 %v481, %v521
  %v527 = vxor.u32 %v526, 2147483648
  %v528 = vmul.f32 %v527, 1.442695
  %v529 = vpow.pop %v528
  %v530 = vadd.f32 %v529, 1.0
  %v531 = vrcp.pop %v530
  %v532 = vmul.f32 1.0, %v531
  %v533 = vtanh.pop %v526
  %v534 = vmul.f32 %v532, %v462
  %536 = vrot.lane.b32.xlu0 %v533, 64
  %v537 = vpop.permute.xlu0 %536
  %v539 = vmul.f32 %v532, %v537
  %541 = vrot.lane.b32.xlu0 %v539, 32
  %v542 = vpop.permute.xlu0 %541
  %v544 = vadd.f32 %v534, %v542
  %v545 = vtanh.pop %v544
  %547 = vrot.lane.b32.xlu0 %v545, 64
  %v548 = vpop.permute.xlu0 %547
  %v550 = vmul.f32 %v532, %v548
  %552 = vrot.lane.b32.xlu0 %v550, 32
  %v553 = vpop.permute.xlu0 %552
  %s555 = scalar_lea.vmem %s2, 20
  %556 = vst.msk [vmem:[%s555] sm:$0xf] %vm144, %v553
  %557 = vrot.lane.b32.xlu0 %v550, 64
  %v558 = vpop.permute.xlu0 %557
  %v560 = vsel %vm149, %v553, %v558
  %v561 = vsel %vm30, %v560, 0.0
  %s562 = scalar_lea.vmem %s0, 24
  %v563 = vld [vmem:[%s562] sm:$0xf]
  %v564 = vpack.c.bf16 %v561, %v561
  %v566 = vsel %vm67, %v564, 0
  %568 = vmatprep.subr.bf16.mxu0 0
  %569 = vmatpush1.bf16.msra.mxu0 %v59
  %570 = vmatprep.subr.bf16.mxu0 0
  %571 = vmatpush1.bf16.msra.mxu0 %v60
  %572 = vmatprep.subr.bf16.mxu0 0
  %573 = vmatpush1.bf16.msra.mxu0 %v61
  %574 = vmatprep.subr.bf16.mxu0 0
  %575 = vmatpush1.bf16.msra.mxu0 %v62
  %576 = vmatprep.subr.bf16.mxu0 0
  %577 = vmatpush1.bf16.msra.mxu0 0
  %578 = vmatprep.subr.bf16.mxu0 0
  %579 = vmatpush1.bf16.msra.mxu0 0
  %580 = vmatprep.subr.bf16.mxu0 0
  %581 = vmatpush1.bf16.msra.mxu0 0
  %582 = vmatprep.subr.bf16.mxu0 0
  %583 = vmatpush1.bf16.msra.mxu0 0
  %584 = vmatprep.subr.bf16.mxu0 0
  %585 = vmatpush1.bf16.msra.mxu0 0
  %586 = vmatprep.subr.bf16.mxu0 0
  %587 = vmatpush1.bf16.msra.mxu0 0
  %588 = vmatprep.subr.bf16.mxu0 0
  %589 = vmatpush1.bf16.msra.mxu0 0
  %590 = vmatprep.subr.bf16.mxu0 0
  %591 = vmatpush1.bf16.msra.mxu0 0
  %592 = vmatprep.subr.bf16.mxu0 0
  %593 = vmatpush1.bf16.msra.mxu0 0
  %594 = vmatprep.subr.bf16.mxu0 0
  %595 = vmatpush1.bf16.msra.mxu0 0
  %596 = vmatprep.subr.bf16.mxu0 0
  %597 = vmatpush1.bf16.msra.mxu0 0
  %598 = vmatprep.subr.bf16.mxu0 0
  %599 = vmatpush1.bf16.msra.mxu0 0
  %600 = vmatprep.mubr.bf16.mxu0 0
  %601 = vmatmul.mubr.bf16.gmra.mrb[0].mxu0 %v566
  %v602 = vpop.f32.mrb[0].mxu0
  %v603 = vadd.f32 0.0, %v602
  %v604 = vpop.f32.mrb[0].mxu0
  %v605 = vpop.f32.mrb[0].mxu0
  %v606 = vpop.f32.mrb[0].mxu0
  %607 = vdwg.mxu0
  %v608 = vadd.f32 %v563, %v603
  %v609 = vxor.u32 %v608, 2147483648
  %v610 = vmul.f32 %v609, 1.442695
  %v611 = vpow.pop %v610
  %v612 = vadd.f32 %v611, 1.0
  %v613 = vrcp.pop %v612
  %v614 = vmul.f32 1.0, %v613
  %v615 = vtanh.pop %v608
  %v616 = vmul.f32 %v614, %v544
  %618 = vrot.lane.b32.xlu0 %v615, 64
  %v619 = vpop.permute.xlu0 %618
  %v621 = vmul.f32 %v614, %v619
  %623 = vrot.lane.b32.xlu0 %v621, 32
  %v624 = vpop.permute.xlu0 %623
  %v626 = vadd.f32 %v616, %v624
  %v627 = vtanh.pop %v626
  %629 = vrot.lane.b32.xlu0 %v627, 64
  %v630 = vpop.permute.xlu0 %629
  %v632 = vmul.f32 %v614, %v630
  %634 = vrot.lane.b32.xlu0 %v632, 32
  %v635 = vpop.permute.xlu0 %634
  %s637 = scalar_lea.vmem %s2, 24
  %638 = vst.msk [vmem:[%s637] sm:$0xf] %vm144, %v635
  %639 = vrot.lane.b32.xlu0 %v632, 64
  %v640 = vpop.permute.xlu0 %639
  %v642 = vsel %vm149, %v635, %v640
  %v643 = vsel %vm30, %v642, 0.0
  %s644 = scalar_lea.vmem %s0, 28
  %v645 = vld [vmem:[%s644] sm:$0xf]
  %v646 = vpack.c.bf16 %v643, %v643
  %v648 = vsel %vm67, %v646, 0
  %650 = vmatprep.subr.bf16.mxu0 0
  %651 = vmatpush1.bf16.msra.mxu0 %v59
  %652 = vmatprep.subr.bf16.mxu0 0
  %653 = vmatpush1.bf16.msra.mxu0 %v60
  %654 = vmatprep.subr.bf16.mxu0 0
  %655 = vmatpush1.bf16.msra.mxu0 %v61
  %656 = vmatprep.subr.bf16.mxu0 0
  %657 = vmatpush1.bf16.msra.mxu0 %v62
  %658 = vmatprep.subr.bf16.mxu0 0
  %659 = vmatpush1.bf16.msra.mxu0 0
  %660 = vmatprep.subr.bf16.mxu0 0
  %661 = vmatpush1.bf16.msra.mxu0 0
  %662 = vmatprep.subr.bf16.mxu0 0
  %663 = vmatpush1.bf16.msra.mxu0 0
  %664 = vmatprep.subr.bf16.mxu0 0
  %665 = vmatpush1.bf16.msra.mxu0 0
  %666 = vmatprep.subr.bf16.mxu0 0
  %667 = vmatpush1.bf16.msra.mxu0 0
  %668 = vmatprep.subr.bf16.mxu0 0
  %669 = vmatpush1.bf16.msra.mxu0 0
  %670 = vmatprep.subr.bf16.mxu0 0
  %671 = vmatpush1.bf16.msra.mxu0 0
  %672 = vmatprep.subr.bf16.mxu0 0
  %673 = vmatpush1.bf16.msra.mxu0 0
  %674 = vmatprep.subr.bf16.mxu0 0
  %675 = vmatpush1.bf16.msra.mxu0 0
  %676 = vmatprep.subr.bf16.mxu0 0
  %677 = vmatpush1.bf16.msra.mxu0 0
  %678 = vmatprep.subr.bf16.mxu0 0
  %679 = vmatpush1.bf16.msra.mxu0 0
  %680 = vmatprep.subr.bf16.mxu0 0
  %681 = vmatpush1.bf16.msra.mxu0 0
  %682 = vmatprep.mubr.bf16.mxu0 0
  %683 = vmatmul.mubr.bf16.gmra.mrb[0].mxu0 %v648
  %v684 = vpop.f32.mrb[0].mxu0
  %v685 = vadd.f32 0.0, %v684
  %v686 = vpop.f32.mrb[0].mxu0
  %v687 = vpop.f32.mrb[0].mxu0
  %v688 = vpop.f32.mrb[0].mxu0
  %689 = vdwg.mxu0
  %v690 = vadd.f32 %v645, %v685
  %v691 = vxor.u32 %v690, 2147483648
  %v692 = vmul.f32 %v691, 1.442695
  %v693 = vpow.pop %v692
  %v694 = vadd.f32 %v693, 1.0
  %v695 = vrcp.pop %v694
  %v696 = vmul.f32 1.0, %v695
  %v697 = vtanh.pop %v690
  %v698 = vmul.f32 %v696, %v626
  %700 = vrot.lane.b32.xlu0 %v697, 64
  %v701 = vpop.permute.xlu0 %700
  %v703 = vmul.f32 %v696, %v701
  %705 = vrot.lane.b32.xlu0 %v703, 32
  %v706 = vpop.permute.xlu0 %705
  %v708 = vadd.f32 %v698, %v706
  %v709 = vtanh.pop %v708
  %711 = vrot.lane.b32.xlu0 %v709, 64
  %v712 = vpop.permute.xlu0 %711
  %v714 = vmul.f32 %v696, %v712
  %716 = vrot.lane.b32.xlu0 %v714, 32
  %v717 = vpop.permute.xlu0 %716
  %s719 = scalar_lea.vmem %s2, 28
  %720 = vst.msk [vmem:[%s719] sm:$0xf] %vm144, %v717
  %721 = vrot.lane.b32.xlu0 %v714, 64
  %v722 = vpop.permute.xlu0 %721
  %v724 = vsel %vm149, %v717, %v722
  %v725 = vsel %vm30, %v724, 0.0
  %vm726 = vcmask 519168
  %727 = vst.msk [vmem:[#allocation2] sm:$0xf] %vm726, %v725
  %729 = vrot.lane.b32.xlu0 %v708, 96
  %v730 = vpop.permute.xlu0 %729
  %732 = vst.msk [vmem:[#allocation3] sm:$0xf] %vm144, %v730
  // Predicated region
  $region14: #{pblstm_forward.3} parent=0 // pred_check
    _
  $region15: #{pblstm_forward.3} parent=0 // pred_check_branch
    %734 = sbr.rel (0) target = $region17
  $region16: #{pblstm_forward.3} parent=0 // pred_region
    _
  $region17: #{pblstm_forward.3} parent=0 // pred_fallthru
    _
  // Predicated region
  $region18: #{pblstm_forward.3} parent=0 // pred_check
    _
  $region19: #{pblstm_forward.3} parent=0 // pred_check_branch
    %736 = sbr.rel (0) target = $region21
  $region20: #{pblstm_forward.3} parent=0 // pred_region
    _
  $region21: #{pblstm_forward.3} parent=0 // pred_fallthru
    _

</llo_original>
